<compile_context>
chip_gen: v7x
topology: tpu7x:2x2x1
jax: 0.10.0
libtpu: 0.0.40
codegen_flags: <defaults>
</compile_context>

<pallas_src>
import functools

import jax
import jax.numpy as jnp
from jax.experimental import pallas as pl
from jax.experimental.pallas import tpu as pltpu

LAYER_DIMS_OUT = [512, 256, 128, 64, 32, 16]  # fc1..fc6 out_features
LANE = 128


def _round_up(x, m):
    return (x + m - 1) // m * m


def init_params(size, key):
    """PyTorch-style nn.Linear init: U(-1/sqrt(fan_in), 1/sqrt(fan_in)).

    Weights are stored transposed vs. PyTorch, i.e. (in_features, out_features),
    so the forward pass is y = x @ W + b."""
    d = size[0] * size[1]
    dims = [d] + LAYER_DIMS_OUT
    weights, biases = [], []
    for i in range(len(dims) - 1):
        fan_in, fan_out = dims[i], dims[i + 1]
        key, kw, kb = jax.random.split(key, 3)
        bound = 1.0 / float(fan_in) ** 0.5
        weights.append(
            jax.random.uniform(kw, (fan_in, fan_out), jnp.float32, -bound, bound))
        biases.append(
            jax.random.uniform(kb, (1, fan_out), jnp.float32, -bound, bound))
    return weights, biases


def pack_params(weights, biases):
    """Pack weights into per-output-width bf16 buffers (no dead zero columns)
    and all biases into one small f32 buffer.

    Layer dims are zero-padded up to multiples of 128 so all in-kernel slices
    are (8,128)-aligned and activations are lane-dense. Zero padding is
    semantics-preserving: padded cols produce 0, LeakyReLU(0)=0, and padded
    rows of the next weight are 0.

    Returns (w_bufs, b_buf, plan, dims_pad) where plan[i] =
    (group_idx, row_offset, padded_in, padded_out) for layer i."""
    dims_in = [w.shape[0] for w in weights]
    dims_out = [w.shape[1] for w in weights]
    pin = [_round_up(d, LANE) for d in dims_in]
    pout = [_round_up(d, LANE) for d in dims_out]

    widths = sorted(set(pout), reverse=True)          # e.g. [512, 256, 128]
    group_of = {w: g for g, w in enumerate(widths)}
    group_rows = [0] * len(widths)
    plan = []
    for i in range(len(weights)):
        g = group_of[pout[i]]
        plan.append((g, group_rows[g], pin[i], pout[i]))
        group_rows[g] += pin[i]                       # pin[i] % 128 == 0 -> aligned

    w_bufs = [jnp.zeros((group_rows[g], widths[g]), jnp.bfloat16)
              for g in range(len(widths))]
    b_buf = jnp.zeros((_round_up(len(weights), 8), max(pout)), jnp.float32)
    for i, (w, b) in enumerate(zip(weights, biases)):
        g, off, _, _ = plan[i]
        w_bufs[g] = w_bufs[g].at[off:off + dims_in[i],
                                 :dims_out[i]].set(w.astype(jnp.bfloat16))
        b_buf = b_buf.at[i, :dims_out[i]].set(b.reshape(-1))

    dims_pad = tuple([pin[0]] + pout)                 # padded activation widths
    return w_bufs, b_buf, tuple(plan), dims_pad


def _encoder_kernel(plan, n_groups, x_ref, *refs):
    """6 chained (TILE_B, d_in) @ (d_in, d_out) bf16 MXU matmuls (+f32 bias,
    LeakyReLU), all operands VMEM-resident."""
    w_refs = refs[:n_groups]
    b_ref = refs[n_groups]
    o_ref = refs[n_groups + 1]

    h = x_ref[...]                                    # bf16 (TILE_B, D_pad)
    for li, (g, off, d_in, d_out) in enumerate(plan):
        w = w_refs[g][off:off + d_in, :d_out]         # bf16, static aligned slice
        b = b_ref[li:li + 1, :d_out]                  # f32 (1, d_out)
        h = jnp.dot(h.astype(jnp.bfloat16), w,
                    preferred_element_type=jnp.float32) + b
        h = jnp.maximum(h, 0.01 * h)                  # LeakyReLU(0.01), every layer
    o_ref[...] = h.astype(o_ref.dtype)                # lane-dense bf16 store


def encoder_forward(x, w_bufs, b_buf, plan, dims_pad, *, tile_b=512):
    """x: (B, H, W) or a single (H, W) sample. Returns f32 (B, 4, 4) or (4, 4)."""
    single = x.ndim == 2
    if single:
        x = x[None]
    B = x.shape[0]
    D = x.shape[1] * x.shape[2]
    d_pad = dims_pad[0]
    out_pad = dims_pad[-1]

    # Tile selection: multiple of 128; aim for >=4 grid steps (>=2 per v7x TC)
    # when the batch allows, never below 128 rows.
    tile_b = max(LANE, (int(tile_b) // LANE) * LANE)
    while tile_b > LANE and pl.cdiv(_round_up(B, LANE), tile_b) < 4:
        tile_b = max(LANE, (tile_b // 2 // LANE) * LANE)
    b_pad = _round_up(B, tile_b)

    # bf16 activation slab (fuses with the reshape/pad), zero-padded to lane/
    # tile boundaries.
    xf = x.reshape(B, D).astype(jnp.bfloat16)
    if (b_pad - B) or (d_pad - D):
        xf = jnp.pad(xf, ((0, b_pad - B), (0, d_pad - D)))

    n_groups = len(w_bufs)
    kernel = functools.partial(_encoder_kernel, plan, n_groups)
    out = pl.pallas_call(
        kernel,
        out_shape=jax.ShapeDtypeStruct((b_pad, out_pad), jnp.bfloat16),
        grid_spec=pltpu.PrefetchScalarGridSpec(
            num_scalar_prefetch=0,
            grid=(b_pad // tile_b,),
            in_specs=(
                # activations: tiled along the batch/grid axis
                [pl.BlockSpec((tile_b, d_pad), lambda i: (i, 0))]
                # packed params: constant index_map -> stay resident across steps
                + [pl.BlockSpec(wb.shape, lambda i: (0, 0)) for wb in w_bufs]
                + [pl.BlockSpec(b_buf.shape, lambda i: (0, 0))]
            ),
            out_specs=pl.BlockSpec((tile_b, out_pad), lambda i: (i, 0)),
        ),
        compiler_params=pltpu.CompilerParams(
            dimension_semantics=("parallel",),
            vmem_limit_bytes=32 << 20,   # safe headroom for tile_b sweeps on all gens
        ),
    )(xf, *w_bufs, b_buf)

    # Un-pad, restore f32, and apply PyTorch's x.view(4, 4).
    enc = out[:B, :16].astype(jnp.float32).reshape(B, 4, 4)
    return enc[0] if single else enc


def reference_forward(x, weights, biases):
    """Pure-JAX reference mirroring the kernel numerics (bf16 inputs/weights,
    f32 accumulation). True-f32 PyTorch parity differs at the ~1e-2 level."""
    B = x.shape[0]
    h = x.reshape(B, -1).astype(jnp.bfloat16)
    for w, b in zip(weights, biases):
        h = jnp.dot(h.astype(jnp.bfloat16), w.astype(jnp.bfloat16),
                    preferred_element_type=jnp.float32) + b
        h = jnp.maximum(h, 0.01 * h)
    return h.reshape(B, 4, 4)


if __name__ == "__main__":
    size = [16, 16]                     # NeuralNet(size) input dimensions
    batch = 256                         # small demo batch; tile logic -> 2 steps
    key = jax.random.PRNGKey(0)
    key, kx = jax.random.split(key)
    x = jax.random.normal(kx, (batch, size[0], size[1]), dtype=jnp.float32)

    weights, biases = init_params(size, key)
    w_bufs, b_buf, plan, dims_pad = pack_params(weights, biases)

    out = encoder_forward(x, w_bufs, b_buf, plan, dims_pad, tile_b=512)
    out = jax.block_until_ready(out)

    ref = reference_forward(x, weights, biases)
    assert out.shape == (batch, 4, 4), out.shape
    assert jnp.allclose(out, ref, atol=2e-2, rtol=2e-2), \
        f"max abs err {float(jnp.max(jnp.abs(out - ref)))}"

    # Single-sample path: exactly the PyTorch module's per-sample forward.
    # TODO(synk): per-sample calls pad B=1 to a 128-row tile; batch callers
    # should use the (B, H, W) path instead of a Python loop.
    out1 = jax.block_until_ready(
        encoder_forward(x[0], w_bufs, b_buf, plan, dims_pad))
    assert out1.shape == (4, 4), out1.shape
    assert jnp.allclose(out1, ref[0], atol=2e-2, rtol=2e-2)

    print("KERNEL_OK")
</pallas_src>

<mosaic_0001>
module attributes {stable_mosaic.version = 11 : i64} {
  func.func @_encoder_kernel(%arg0: i32, %arg1: memref<128x256xbf16, #tpu.memory_space<vmem>>, %arg2: memref<256x512xbf16, #tpu.memory_space<vmem>>, %arg3: memref<512x256xbf16, #tpu.memory_space<vmem>>, %arg4: memref<640x128xbf16, #tpu.memory_space<vmem>>, %arg5: memref<8x512xf32, #tpu.memory_space<vmem>>, %arg6: memref<128x128xbf16, #tpu.memory_space<vmem>>) attributes {dimension_semantics = [#tpu.dimension_semantics<parallel>], iteration_bounds = array<i64: 2>, scalar_prefetch = 0 : i64, scratch_operands = 0 : i64, tpu.core_type = #tpu.core_type<tc>, window_params = [{transform_indices = @transform_0, window_bounds = array<i64: 128, 256>}, {pipeline_mode = #tpu.pipeline_mode<synchronous>, transform_indices = @transform_1, window_bounds = array<i64: 256, 512>}, {pipeline_mode = #tpu.pipeline_mode<synchronous>, transform_indices = @transform_2, window_bounds = array<i64: 512, 256>}, {pipeline_mode = #tpu.pipeline_mode<synchronous>, transform_indices = @transform_3, window_bounds = array<i64: 640, 128>}, {pipeline_mode = #tpu.pipeline_mode<synchronous>, transform_indices = @transform_4, window_bounds = array<i64: 8, 512>}, {transform_indices = @transform_5, window_bounds = array<i64: 128, 128>}]} {
    %c0 = arith.constant 0 : index
    %c0_0 = arith.constant 0 : index
    %0 = vector.load %arg1[%c0, %c0_0] : memref<128x256xbf16, #tpu.memory_space<vmem>>, vector<128x256xbf16>
    %c0_1 = arith.constant 0 : index
    %c0_2 = arith.constant 0 : index
    %1 = vector.load %arg2[%c0_1, %c0_2] : memref<256x512xbf16, #tpu.memory_space<vmem>>, vector<256x512xbf16>
    %c0_3 = arith.constant 0 : index
    %c0_4 = arith.constant 0 : index
    %2 = vector.load %arg5[%c0_3, %c0_4] : memref<8x512xf32, #tpu.memory_space<vmem>>, vector<1x512xf32>
    %cst = arith.constant dense<0.000000e+00> : vector<128x512xf32>
    %3 = tpu.matmul %0, %1, %cst {dimension_numbers = #tpu.dot_dimension_numbers<[1], [0], [0], [1], [0, 0, 1, 1], [], []>} : vector<128x256xbf16>, vector<256x512xbf16>, vector<128x512xf32> -> vector<128x512xf32>
    %4 = vector.broadcast %2 : vector<1x512xf32> to vector<128x512xf32>
    %5 = arith.addf %3, %4 : vector<128x512xf32>
    %cst_5 = arith.constant 0.00999999977 : f32
    %6 = vector.broadcast %cst_5 : f32 to vector<128x512xf32>
    %7 = arith.mulf %6, %5 : vector<128x512xf32>
    %8 = arith.maximumf %5, %7 : vector<128x512xf32>
    %c0_6 = arith.constant 0 : index
    %c0_7 = arith.constant 0 : index
    %9 = vector.load %arg3[%c0_6, %c0_7] : memref<512x256xbf16, #tpu.memory_space<vmem>>, vector<512x256xbf16>
    %c1 = arith.constant 1 : index
    %c0_8 = arith.constant 0 : index
    %10 = vector.load %arg5[%c1, %c0_8] : memref<8x512xf32, #tpu.memory_space<vmem>>, vector<1x256xf32>
    %11 = arith.truncf %8 : vector<128x512xf32> to vector<128x512xbf16>
    %cst_9 = arith.constant dense<0.000000e+00> : vector<128x256xf32>
    %12 = tpu.matmul %11, %9, %cst_9 {dimension_numbers = #tpu.dot_dimension_numbers<[1], [0], [0], [1], [0, 0, 1, 1], [], []>} : vector<128x512xbf16>, vector<512x256xbf16>, vector<128x256xf32> -> vector<128x256xf32>
    %13 = vector.broadcast %10 : vector<1x256xf32> to vector<128x256xf32>
    %14 = arith.addf %12, %13 : vector<128x256xf32>
    %cst_10 = arith.constant 0.00999999977 : f32
    %15 = vector.broadcast %cst_10 : f32 to vector<128x256xf32>
    %16 = arith.mulf %15, %14 : vector<128x256xf32>
    %17 = arith.maximumf %14, %16 : vector<128x256xf32>
    %c0_11 = arith.constant 0 : index
    %c0_12 = arith.constant 0 : index
    %18 = vector.load %arg4[%c0_11, %c0_12] : memref<640x128xbf16, #tpu.memory_space<vmem>>, vector<256x128xbf16>
    %c2 = arith.constant 2 : index
    %c0_13 = arith.constant 0 : index
    %19 = vector.load %arg5[%c2, %c0_13] : memref<8x512xf32, #tpu.memory_space<vmem>>, vector<1x128xf32>
    %20 = arith.truncf %17 : vector<128x256xf32> to vector<128x256xbf16>
    %cst_14 = arith.constant dense<0.000000e+00> : vector<128x128xf32>
    %21 = tpu.matmul %20, %18, %cst_14 {dimension_numbers = #tpu.dot_dimension_numbers<[1], [0], [0], [1], [0, 0, 1, 1], [], []>} : vector<128x256xbf16>, vector<256x128xbf16>, vector<128x128xf32> -> vector<128x128xf32>
    %22 = vector.broadcast %19 : vector<1x128xf32> to vector<128x128xf32>
    %23 = arith.addf %21, %22 : vector<128x128xf32>
    %cst_15 = arith.constant 0.00999999977 : f32
    %24 = vector.broadcast %cst_15 : f32 to vector<128x128xf32>
    %25 = arith.mulf %24, %23 : vector<128x128xf32>
    %26 = arith.maximumf %23, %25 : vector<128x128xf32>
    %c256 = arith.constant 256 : index
    %c0_16 = arith.constant 0 : index
    %27 = vector.load %arg4[%c256, %c0_16] : memref<640x128xbf16, #tpu.memory_space<vmem>>, vector<128x128xbf16>
    %c3 = arith.constant 3 : index
    %c0_17 = arith.constant 0 : index
    %28 = vector.load %arg5[%c3, %c0_17] : memref<8x512xf32, #tpu.memory_space<vmem>>, vector<1x128xf32>
    %29 = arith.truncf %26 : vector<128x128xf32> to vector<128x128xbf16>
    %cst_18 = arith.constant dense<0.000000e+00> : vector<128x128xf32>
    %30 = tpu.matmul %29, %27, %cst_18 {dimension_numbers = #tpu.dot_dimension_numbers<[1], [0], [0], [1], [0, 0, 1, 1], [], []>} : vector<128x128xbf16>, vector<128x128xbf16>, vector<128x128xf32> -> vector<128x128xf32>
    %31 = vector.broadcast %28 : vector<1x128xf32> to vector<128x128xf32>
    %32 = arith.addf %30, %31 : vector<128x128xf32>
    %cst_19 = arith.constant 0.00999999977 : f32
    %33 = vector.broadcast %cst_19 : f32 to vector<128x128xf32>
    %34 = arith.mulf %33, %32 : vector<128x128xf32>
    %35 = arith.maximumf %32, %34 : vector<128x128xf32>
    %c384 = arith.constant 384 : index
    %c0_20 = arith.constant 0 : index
    %36 = vector.load %arg4[%c384, %c0_20] : memref<640x128xbf16, #tpu.memory_space<vmem>>, vector<128x128xbf16>
    %c4 = arith.constant 4 : index
    %c0_21 = arith.constant 0 : index
    %37 = vector.load %arg5[%c4, %c0_21] : memref<8x512xf32, #tpu.memory_space<vmem>>, vector<1x128xf32>
    %38 = arith.truncf %35 : vector<128x128xf32> to vector<128x128xbf16>
    %cst_22 = arith.constant dense<0.000000e+00> : vector<128x128xf32>
    %39 = tpu.matmul %38, %36, %cst_22 {dimension_numbers = #tpu.dot_dimension_numbers<[1], [0], [0], [1], [0, 0, 1, 1], [], []>} : vector<128x128xbf16>, vector<128x128xbf16>, vector<128x128xf32> -> vector<128x128xf32>
    %40 = vector.broadcast %37 : vector<1x128xf32> to vector<128x128xf32>
    %41 = arith.addf %39, %40 : vector<128x128xf32>
    %cst_23 = arith.constant 0.00999999977 : f32
    %42 = vector.broadcast %cst_23 : f32 to vector<128x128xf32>
    %43 = arith.mulf %42, %41 : vector<128x128xf32>
    %44 = arith.maximumf %41, %43 : vector<128x128xf32>
    %c512 = arith.constant 512 : index
    %c0_24 = arith.constant 0 : index
    %45 = vector.load %arg4[%c512, %c0_24] : memref<640x128xbf16, #tpu.memory_space<vmem>>, vector<128x128xbf16>
    %c5 = arith.constant 5 : index
    %c0_25 = arith.constant 0 : index
    %46 = vector.load %arg5[%c5, %c0_25] : memref<8x512xf32, #tpu.memory_space<vmem>>, vector<1x128xf32>
    %47 = arith.truncf %44 : vector<128x128xf32> to vector<128x128xbf16>
    %cst_26 = arith.constant dense<0.000000e+00> : vector<128x128xf32>
    %48 = tpu.matmul %47, %45, %cst_26 {dimension_numbers = #tpu.dot_dimension_numbers<[1], [0], [0], [1], [0, 0, 1, 1], [], []>} : vector<128x128xbf16>, vector<128x128xbf16>, vector<128x128xf32> -> vector<128x128xf32>
    %49 = vector.broadcast %46 : vector<1x128xf32> to vector<128x128xf32>
    %50 = arith.addf %48, %49 : vector<128x128xf32>
    %cst_27 = arith.constant 0.00999999977 : f32
    %51 = vector.broadcast %cst_27 : f32 to vector<128x128xf32>
    %52 = arith.mulf %51, %50 : vector<128x128xf32>
    %53 = arith.maximumf %50, %52 : vector<128x128xf32>
    %54 = arith.truncf %53 : vector<128x128xf32> to vector<128x128xbf16>
    %c0_28 = arith.constant 0 : index
    %c0_29 = arith.constant 0 : index
    %55 = vector.load %arg6[%c0_28, %c0_29] : memref<128x128xbf16, #tpu.memory_space<vmem>>, vector<128x128xbf16>
    tpu.vector_store %arg6[%c0_28, %c0_29], %54 {strides = array<i32>} : memref<128x128xbf16, #tpu.memory_space<vmem>>, vector<128x128xbf16>,
    return
  }
  func.func @transform_0(%arg0: i32) -> (i32, i32) {
    %c0_i32 = arith.constant 0 : i32
    %c0_i32_0 = arith.constant 0 : i32
    return %arg0, %c0_i32 : i32, i32
  }
  func.func @transform_1(%arg0: i32) -> (i32, i32) {
    %c0_i32 = arith.constant 0 : i32
    %c0_i32_0 = arith.constant 0 : i32
    %c0_i32_1 = arith.constant 0 : i32
    return %c0_i32, %c0_i32_0 : i32, i32
  }
  func.func @transform_2(%arg0: i32) -> (i32, i32) {
    %c0_i32 = arith.constant 0 : i32
    %c0_i32_0 = arith.constant 0 : i32
    %c0_i32_1 = arith.constant 0 : i32
    return %c0_i32, %c0_i32_0 : i32, i32
  }
  func.func @transform_3(%arg0: i32) -> (i32, i32) {
    %c0_i32 = arith.constant 0 : i32
    %c0_i32_0 = arith.constant 0 : i32
    %c0_i32_1 = arith.constant 0 : i32
    return %c0_i32, %c0_i32_0 : i32, i32
  }
  func.func @transform_4(%arg0: i32) -> (i32, i32) {
    %c0_i32 = arith.constant 0 : i32
    %c0_i32_0 = arith.constant 0 : i32
    %c0_i32_1 = arith.constant 0 : i32
    return %c0_i32, %c0_i32_0 : i32, i32
  }
  func.func @transform_5(%arg0: i32) -> (i32, i32) {
    %c0_i32 = arith.constant 0 : i32
    %c0_i32_0 = arith.constant 0 : i32
    return %arg0, %c0_i32 : i32, i32
  }
}

</mosaic_0001>

<llo_original>
// kernel: tpu_custom_call.1
$region0: #{tpu_custom_call.1}
  #allocation0 [shape = 'u32[]', space=smem, size = 0x4, offset = 0x4, fixed_abs, tag = 'smem constant byte address 0x4 - core index']
  #allocation1 [shape = 'u32[144,128]{1,0:T(1,128)}', space=vmem, size = 0x12000, scoped, tag = 'internal scratch']
  %s0 = inlined_call_operand.hbm [shape: bf16[256,256], index: 0, kind: input, shape index: {}]
  %s1 = inlined_call_operand.hbm [shape: bf16[256,512], index: 1, kind: input, shape index: {}]
  %s2 = inlined_call_operand.hbm [shape: bf16[512,256], index: 2, kind: input, shape index: {}]
  %s3 = inlined_call_operand.hbm [shape: bf16[640,128], index: 3, kind: input, shape index: {}]
  %s4 = inlined_call_operand.hbm [shape: f32[8,512], index: 4, kind: input, shape index: {}]
  %s5 = inlined_call_operand.hbm [shape: bf16[256,128], index: 5, kind: output, shape index: {}]
  %s6 = sld [smem:[#allocation0]]
  $region73: #{tpu_custom_call.1} parent=0
    _
  %s8 = ssub.s32 1, %s6
  %s9 = scalar_select 0, %s8, %s6
  $region1: #{tpu_custom_call.1} parent=0
    #allocation2 [shape = 'u8[131072]{0}', space=vmem, size = 0x20000, scoped, tag = 'input window, operand 0']
    #allocation3 [shape = 's32[2]{0}', space=sflag, size = 0x8, scoped, tag = 'scoped memory for tpu_custom_call.1']
    #allocation4 [shape = 's32[2]{0}', space=sflag, size = 0x8, scoped, tag = 'scoped memory for tpu_custom_call.1']
    #allocation5 [shape = 'u8[262144]{0}', space=vmem, size = 0x40000, scoped, tag = 'input window, operand 1, single buffered']
    #allocation6 [shape = 's32[1]{0}', space=sflag, size = 0x4, scoped, tag = 'scoped memory for tpu_custom_call.1']
    #allocation7 [shape = 'u8[262144]{0}', space=vmem, size = 0x40000, scoped, tag = 'input window, operand 2, single buffered']
    #allocation8 [shape = 'u8[163840]{0}', space=vmem, size = 0x28000, scoped, tag = 'input window, operand 3, single buffered']
    #allocation9 [shape = 's32[1]{0}', space=sflag, size = 0x4, scoped, tag = 'scoped memory for tpu_custom_call.1']
    #allocation10 [shape = 'u8[16384]{0}', space=vmem, size = 0x4000, scoped, tag = 'input window, operand 4, single buffered']
    #allocation11 [shape = 'u8[65536]{0}', space=vmem, size = 0x10000, scoped, tag = 'output window, operand 0']
    %10 = vsyncpa [#allocation3], 0
    %s11 = scalar_lea.sflag [#allocation3], 1
    %12 = vsyncpa %s11, 0
    %13 = vsyncpa [#allocation6], 0
    %14 = vsyncpa [#allocation9], 0
    %15 = vsyncpa [#allocation4], 0
    %s16 = scalar_lea.sflag [#allocation4], 1
    %17 = vsyncpa %s16, 0
    loop: start=0, step=1, limit=4
    $region2: #{tpu_custom_call.1} parent=1 // loop_pre_header
      _
    $region3: #{tpu_custom_call.1} parent=1 // loop_header
      %s19 = sphi 0, %s23
      %p20 = scmp.ge.s32.totalorder %s19, 4
      %s29 = sphi 0, %s31
      %s32 = sphi 0, %s29
      %s33 = sphi 0, %s32
      %s49 = sphi 0, %s33
      %s53 = sphi 0, %s53
      %s55 = sphi 0, %s53
      %s56 = sphi 0, %s55
      %s70 = sphi 0, %s56
      %s74 = sphi 0, %s74
      %s76 = sphi 0, %s74
      %s77 = sphi 0, %s76
      %s91 = sphi 0, %s77
      %s95 = sphi 0, %s95
      %s97 = sphi 0, %s95
      %s98 = sphi 0, %s97
      %s112 = sphi 0, %s98
      %s116 = sphi 0, %s116
      %s118 = sphi 0, %s116
      %s119 = sphi 0, %s118
      %s133 = sphi 0, %s119
      %s139 = sphi 0, %s141
      %s142 = sphi 0, %s139
      %s143 = sphi 0, %s142
      %s159 = sphi 0, %s143
    $region4: #{tpu_custom_call.1} parent=1 // loop_header_branch
      %22 = sbr.rel (%p20) target = $region8
    $region5: #{tpu_custom_call.1} parent=1 // loop_body
      %s24 = ssub.s32 %s19, 1
      %s25 = ssub.s32 %s19, 2
      %s26 = sadd.s32 %s19, 1
      %s27 = ssub.s32 %s19, %s26
      %p28 = scmp.eq.s32.totalorder %s27, 0
      %s30 = sadd.s32 %s29, 1
      %s31 = scalar_select %p28, %s29, %s30
      %p34 = pneg %p28
      %p35 = scmp.eq.s32.totalorder %s19, 1
      %p36 = por %p34, %p35
      %p37 = scmp.ne.s32.totalorder %s29, %s32
      %p38 = scmp.eq.s32.totalorder %s19, 0
      %p39 = por %p37, %p38
      %p40 = scmp.ne.s32.totalorder %s29, %s32
      %p41 = scmp.eq.s32.totalorder %s24, 1
      %p42 = por %p40, %p41
      %p43 = scmp.ne.s32.totalorder %s32, %s33
      %p44 = scmp.eq.s32.totalorder %s24, 0
      %p45 = por %p43, %p44
      %p46 = scmp.ne.s32.totalorder %s32, %s33
      %p47 = scmp.eq.s32.totalorder %s25, 1
      %p48 = por %p46, %p47
      %p50 = scmp.ne.s32.totalorder %s33, %s49
      %p51 = scmp.eq.s32.totalorder %s25, 0
      %p52 = por %p50, %p51
      %s54 = sadd.s32 %s53, 1
      %p57 = scmp.eq.s32.totalorder %s19, 1
      %p58 = scmp.ne.s32.totalorder %s53, %s55
      %p59 = scmp.eq.s32.totalorder %s19, 0
      %p60 = por %p58, %p59
      %p61 = scmp.ne.s32.totalorder %s53, %s55
      %p62 = scmp.eq.s32.totalorder %s24, 1
      %p63 = por %p61, %p62
      %p64 = scmp.ne.s32.totalorder %s55, %s56
      %p65 = scmp.eq.s32.totalorder %s24, 0
      %p66 = por %p64, %p65
      %p67 = scmp.ne.s32.totalorder %s55, %s56
      %p68 = scmp.eq.s32.totalorder %s25, 1
      %p69 = por %p67, %p68
      %p71 = scmp.ne.s32.totalorder %s56, %s70
      %p72 = scmp.eq.s32.totalorder %s25, 0
      %p73 = por %p71, %p72
      %s75 = sadd.s32 %s74, 1
      %p78 = scmp.eq.s32.totalorder %s19, 1
      %p79 = scmp.ne.s32.totalorder %s74, %s76
      %p80 = scmp.eq.s32.totalorder %s19, 0
      %p81 = por %p79, %p80
      %p82 = scmp.ne.s32.totalorder %s74, %s76
      %p83 = scmp.eq.s32.totalorder %s24, 1
      %p84 = por %p82, %p83
      %p85 = scmp.ne.s32.totalorder %s76, %s77
      %p86 = scmp.eq.s32.totalorder %s24, 0
      %p87 = por %p85, %p86
      %p88 = scmp.ne.s32.totalorder %s76, %s77
      %p89 = scmp.eq.s32.totalorder %s25, 1
      %p90 = por %p88, %p89
      %p92 = scmp.ne.s32.totalorder %s77, %s91
      %p93 = scmp.eq.s32.totalorder %s25, 0
      %p94 = por %p92, %p93
      %s96 = sadd.s32 %s95, 1
      %p99 = scmp.eq.s32.totalorder %s19, 1
      %p100 = scmp.ne.s32.totalorder %s95, %s97
      %p101 = scmp.eq.s32.totalorder %s19, 0
      %p102 = por %p100, %p101
      %p103 = scmp.ne.s32.totalorder %s95, %s97
      %p104 = scmp.eq.s32.totalorder %s24, 1
      %p105 = por %p103, %p104
      %p106 = scmp.ne.s32.totalorder %s97, %s98
      %p107 = scmp.eq.s32.totalorder %s24, 0
      %p108 = por %p106, %p107
      %p109 = scmp.ne.s32.totalorder %s97, %s98
      %p110 = scmp.eq.s32.totalorder %s25, 1
      %p111 = por %p109, %p110
      %p113 = scmp.ne.s32.totalorder %s98, %s112
      %p114 = scmp.eq.s32.totalorder %s25, 0
      %p115 = por %p113, %p114
      %s117 = sadd.s32 %s116, 1
      %p120 = scmp.eq.s32.totalorder %s19, 1
      %p121 = scmp.ne.s32.totalorder %s116, %s118
      %p122 = scmp.eq.s32.totalorder %s19, 0
      %p123 = por %p121, %p122
      %p124 = scmp.ne.s32.totalorder %s116, %s118
      %p125 = scmp.eq.s32.totalorder %s24, 1
      %p126 = por %p124, %p125
      %p127 = scmp.ne.s32.totalorder %s118, %s119
      %p128 = scmp.eq.s32.totalorder %s24, 0
      %p129 = por %p127, %p128
      %p130 = scmp.ne.s32.totalorder %s118, %s119
      %p131 = scmp.eq.s32.totalorder %s25, 1
      %p132 = por %p130, %p131
      %p134 = scmp.ne.s32.totalorder %s119, %s133
      %p135 = scmp.eq.s32.totalorder %s25, 0
      %p136 = por %p134, %p135
      %s137 = ssub.s32 %s19, %s26
      %p138 = scmp.eq.s32.totalorder %s137, 0
      %s140 = sadd.s32 %s139, 1
      %s141 = scalar_select %p138, %s139, %s140
      %p144 = pneg %p138
      %p145 = scmp.eq.s32.totalorder %s19, 1
      %p146 = por %p144, %p145
      %p147 = scmp.ne.s32.totalorder %s139, %s142
      %p148 = scmp.eq.s32.totalorder %s19, 0
      %p149 = por %p147, %p148
      %p150 = scmp.ne.s32.totalorder %s139, %s142
      %p151 = scmp.eq.s32.totalorder %s24, 1
      %p152 = por %p150, %p151
      %p153 = scmp.ne.s32.totalorder %s142, %s143
      %p154 = scmp.eq.s32.totalorder %s24, 0
      %p155 = por %p153, %p154
      %p156 = scmp.ne.s32.totalorder %s142, %s143
      %p157 = scmp.eq.s32.totalorder %s25, 1
      %p158 = por %p156, %p157
      %p160 = scmp.ne.s32.totalorder %s143, %s159
      %p161 = scmp.eq.s32.totalorder %s25, 0
      %p162 = por %p160, %p161
      %p163 = scmp.le.s32.totalorder 1, %s19
      %p164 = scmp.lt.s32.totalorder %s19, 3
      %p165 = pnand %p163, %p164
      %p166 = pneg %p165
      // Predicated region
      $region9: #{tpu_custom_call.1} parent=5 // pred_check
        _
      $region10: #{tpu_custom_call.1} parent=5 // pred_check_branch
        %168 = sbr.rel (%p165) target = $region12
      $region11: #{tpu_custom_call.1} parent=5 // pred_region
        %s169 = ssub.s32 %s19, 1
        // Predicated region
        $region13: #{tpu_custom_call.1} parent=11 // pred_check
          %p170 = pneg %p66
        $region14: #{tpu_custom_call.1} parent=11 // pred_check_branch
          %172 = sbr.rel (%p170) target = $region16
        $region15: #{tpu_custom_call.1} parent=11 // pred_region
          %s174 = ssub.s32 8192, 8192
          %175 = vsyncadd [#allocation6], %s174
          %s176 = sshll.u32 [#allocation5], 4
          %s177 = int_to_ptr.vmem [resolvable:$true] %s176
          %182 = dma.hbm_to_vmem [thread:$0]  %s1, 8192, %s177, [#allocation6], 256, 256, 16
        $region16: #{tpu_custom_call.1} parent=11 // pred_fallthru
          _
        // Predicated region
        $region17: #{tpu_custom_call.1} parent=11 // pred_check
          %p183 = pneg %p87
        $region18: #{tpu_custom_call.1} parent=11 // pred_check_branch
          %185 = sbr.rel (%p183) target = $region20
        $region19: #{tpu_custom_call.1} parent=11 // pred_region
          %s187 = ssub.s32 8192, 8192
          %188 = vsyncadd [#allocation6], %s187
          %s189 = sshll.u32 [#allocation7], 4
          %s190 = int_to_ptr.vmem [resolvable:$true] %s189
          %195 = dma.hbm_to_vmem [thread:$0]  %s2, 8192, %s190, [#allocation6], 128, 128, 8
        $region20: #{tpu_custom_call.1} parent=11 // pred_fallthru
          _
        // Predicated region
        $region21: #{tpu_custom_call.1} parent=11 // pred_check
          %p196 = pneg %p108
        $region22: #{tpu_custom_call.1} parent=11 // pred_check_branch
          %198 = sbr.rel (%p196) target = $region24
        $region23: #{tpu_custom_call.1} parent=11 // pred_region
          %s200 = ssub.s32 5120, 5120
          %201 = vsyncadd [#allocation9], %s200
          %s202 = sshll.u32 [#allocation8], 4
          %s203 = int_to_ptr.vmem [resolvable:$true] %s202
          %208 = dma.hbm_to_vmem [thread:$0]  %s3, 5120, %s203, [#allocation9], 64, 64, 4
        $region24: #{tpu_custom_call.1} parent=11 // pred_fallthru
          _
        // Predicated region
        $region25: #{tpu_custom_call.1} parent=11 // pred_check
          %p209 = pneg %p129
        $region26: #{tpu_custom_call.1} parent=11 // pred_check_branch
          %211 = sbr.rel (%p209) target = $region28
        $region27: #{tpu_custom_call.1} parent=11 // pred_region
          %s213 = ssub.s32 512, 512
          %214 = vsyncadd [#allocation9], %s213
          %s216 = sshll.u32 [#allocation10], 4
          %s217 = int_to_ptr.vmem [resolvable:$true] %s216
          %219 = dma.hbm_to_vmem [thread:$0]  %s4, 512, %s217, [#allocation9]
        $region28: #{tpu_custom_call.1} parent=11 // pred_fallthru
          _
      $region12: #{tpu_custom_call.1} parent=5 // pred_fallthru
        _
      %p220 = scmp.lt.s32.totalorder %s19, 2
      // Predicated region
      $region29: #{tpu_custom_call.1} parent=5 // pred_check
        %p221 = pneg %p220
      $region30: #{tpu_custom_call.1} parent=5 // pred_check_branch
        %223 = sbr.rel (%p221) target = $region32
      $region31: #{tpu_custom_call.1} parent=5 // pred_region
        // Predicated region
        $region33: #{tpu_custom_call.1} parent=31 // pred_check
          %p224 = pneg %p39
        $region34: #{tpu_custom_call.1} parent=31 // pred_check_branch
          %226 = sbr.rel (%p224) target = $region36
        $region35: #{tpu_custom_call.1} parent=31 // pred_region
          %s227 = sand.u32 %s29, 1
          %s228 = scalar_lea.sflag [#allocation3], %s227
          %s229 = sand.u32 %s29, 1
          %s230 = smul.addr %s229, 128
          %s231 = scalar_lea.vmem [#allocation2], %s230
          %s232 = smul.u32 16, %s19
          %s234 = ssub.s32 2048, 2048
          %235 = vsyncadd %s228, %s234
          %s236 = smul.addr %s232, 2
          %s237 = smul.addr %s236, 64
          %s238 = scalar_lea.hbm %s0, %s237
          %s239 = sshll.u32 %s231, 4
          %s240 = int_to_ptr.vmem [resolvable:$true] %s239
          %245 = dma.hbm_to_vmem [thread:$0]  %s238, 2048, %s240, %s228, 128, 128, 8
        $region36: #{tpu_custom_call.1} parent=31 // pred_fallthru
          _
      $region32: #{tpu_custom_call.1} parent=5 // pred_fallthru
        _
      %p246 = scmp.le.s32.totalorder 1, %s19
      %p247 = scmp.lt.s32.totalorder %s19, 3
      %p248 = pnand %p246, %p247
      %p249 = pneg %p248
      // Predicated region
      $region37: #{tpu_custom_call.1} parent=5 // pred_check
        _
      $region38: #{tpu_custom_call.1} parent=5 // pred_check_branch
        %251 = sbr.rel (%p248) target = $region40
      $region39: #{tpu_custom_call.1} parent=5 // pred_region
        %s252 = ssub.s32 %s19, 1
        %s253 = sand.u32 %s32, 1
        %s254 = scalar_lea.sflag [#allocation3], %s253
        %s255 = sand.u32 %s32, 1
        %s256 = smul.addr %s255, 128
        %s257 = scalar_lea.vmem [#allocation2], %s256
        // Predicated region
        $region41: #{tpu_custom_call.1} parent=39 // pred_check
          %p258 = pneg %p45
        $region42: #{tpu_custom_call.1} parent=39 // pred_check_branch
          %260 = sbr.rel (%p258) target = $region44
        $region43: #{tpu_custom_call.1} parent=39 // pred_region
          %261 = dma.done %s254, 2048
        $region44: #{tpu_custom_call.1} parent=39 // pred_fallthru
          _
        // Predicated region
        $region45: #{tpu_custom_call.1} parent=39 // pred_check
          %p262 = pneg %p66
        $region46: #{tpu_custom_call.1} parent=39 // pred_check_branch
          %264 = sbr.rel (%p262) target = $region48
        $region47: #{tpu_custom_call.1} parent=39 // pred_region
          %265 = dma.done [#allocation6], 8192
        $region48: #{tpu_custom_call.1} parent=39 // pred_fallthru
          _
        // Predicated region
        $region49: #{tpu_custom_call.1} parent=39 // pred_check
          %p266 = pneg %p87
        $region50: #{tpu_custom_call.1} parent=39 // pred_check_branch
          %268 = sbr.rel (%p266) target = $region52
        $region51: #{tpu_custom_call.1} parent=39 // pred_region
          %269 = dma.done [#allocation6], 8192
        $region52: #{tpu_custom_call.1} parent=39 // pred_fallthru
          _
        // Predicated region
        $region53: #{tpu_custom_call.1} parent=39 // pred_check
          %p270 = pneg %p108
        $region54: #{tpu_custom_call.1} parent=39 // pred_check_branch
          %272 = sbr.rel (%p270) target = $region56
        $region55: #{tpu_custom_call.1} parent=39 // pred_region
          %273 = dma.done [#allocation9], 5120
        $region56: #{tpu_custom_call.1} parent=39 // pred_fallthru
          _
        // Predicated region
        $region57: #{tpu_custom_call.1} parent=39 // pred_check
          %p274 = pneg %p129
        $region58: #{tpu_custom_call.1} parent=39 // pred_check_branch
          %276 = sbr.rel (%p274) target = $region60
        $region59: #{tpu_custom_call.1} parent=39 // pred_region
          %277 = dma.done [#allocation9], 512
        $region60: #{tpu_custom_call.1} parent=39 // pred_fallthru
          _
        %s278 = sand.u32 %s32, 1
        %s279 = scalar_lea.sflag [#allocation3], %s278
        %s280 = sand.u32 %s32, 1
        %s281 = smul.addr %s280, 128
        %s282 = scalar_lea.vmem [#allocation2], %s281
        %p283 = pneg %p45
        %p284 = pneg %p42
        %p285 = pneg %p66
        %p286 = pneg %p63
        %p287 = pneg %p87
        %p288 = pneg %p84
        %p289 = pneg %p108
        %p290 = pneg %p105
        %p291 = pneg %p129
        %p292 = pneg %p126
        %p293 = pneg %p155
        %p294 = pneg %p152
        %s295 = sand.u32 %s142, 1
        %s296 = scalar_lea.sflag [#allocation4], %s295
        %s297 = sand.u32 %s142, 1
        %s298 = smul.addr %s297, 64
        %s299 = scalar_lea.vmem [#allocation11], %s298
        %s300 = smul.u32 16, %s24
        %s301 = smul.u32 16, %s24
        %v303 = vld [vmem:[%s257] sm:$0xff]
        %v304 = vld [vmem:[%s257 + $0x8] sm:$0xff]
        %v305 = vld [vmem:[%s257 + $0x10] sm:$0xff]
        %v306 = vld [vmem:[%s257 + $0x18] sm:$0xff]
        %v307 = vld [vmem:[%s257 + $0x20] sm:$0xff]
        %v308 = vld [vmem:[%s257 + $0x28] sm:$0xff]
        %v309 = vld [vmem:[%s257 + $0x30] sm:$0xff]
        %v310 = vld [vmem:[%s257 + $0x38] sm:$0xff]
        %v311 = vld [vmem:[%s257 + $0x40] sm:$0xff]
        %v312 = vld [vmem:[%s257 + $0x48] sm:$0xff]
        %v313 = vld [vmem:[%s257 + $0x50] sm:$0xff]
        %v314 = vld [vmem:[%s257 + $0x58] sm:$0xff]
        %v315 = vld [vmem:[%s257 + $0x60] sm:$0xff]
        %v316 = vld [vmem:[%s257 + $0x68] sm:$0xff]
        %v317 = vld [vmem:[%s257 + $0x70] sm:$0xff]
        %v318 = vld [vmem:[%s257 + $0x78] sm:$0xff]
        %v319 = vld [vmem:[#allocation5] sm:$0xff]
        %v320 = vld [vmem:[#allocation5 + $0x8] sm:$0xff]
        %v321 = vld [vmem:[#allocation5 + $0x10] sm:$0xff]
        %v322 = vld [vmem:[#allocation5 + $0x18] sm:$0xff]
        %v323 = vld [vmem:[#allocation5 + $0x20] sm:$0xff]
        %v324 = vld [vmem:[#allocation5 + $0x28] sm:$0xff]
        %v325 = vld [vmem:[#allocation5 + $0x30] sm:$0xff]
        %v326 = vld [vmem:[#allocation5 + $0x38] sm:$0xff]
        %v327 = vld [vmem:[#allocation5 + $0x40] sm:$0xff]
        %v328 = vld [vmem:[#allocation5 + $0x48] sm:$0xff]
        %v329 = vld [vmem:[#allocation5 + $0x50] sm:$0xff]
        %v330 = vld [vmem:[#allocation5 + $0x58] sm:$0xff]
        %v331 = vld [vmem:[#allocation5 + $0x60] sm:$0xff]
        %v332 = vld [vmem:[#allocation5 + $0x68] sm:$0xff]
        %v333 = vld [vmem:[#allocation5 + $0x70] sm:$0xff]
        %v334 = vld [vmem:[#allocation5 + $0x78] sm:$0xff]
        %v335 = vld [vmem:[#allocation5 + $0x80] sm:$0xff]
        %v336 = vld [vmem:[#allocation5 + $0x88] sm:$0xff]
        %v337 = vld [vmem:[#allocation5 + $0x90] sm:$0xff]
        %v338 = vld [vmem:[#allocation5 + $0x98] sm:$0xff]
        %v339 = vld [vmem:[#allocation5 + $0xa0] sm:$0xff]
        %v340 = vld [vmem:[#allocation5 + $0xa8] sm:$0xff]
        %v341 = vld [vmem:[#allocation5 + $0xb0] sm:$0xff]
        %v342 = vld [vmem:[#allocation5 + $0xb8] sm:$0xff]
        %v343 = vld [vmem:[#allocation5 + $0xc0] sm:$0xff]
        %v344 = vld [vmem:[#allocation5 + $0xc8] sm:$0xff]
        %v345 = vld [vmem:[#allocation5 + $0xd0] sm:$0xff]
        %v346 = vld [vmem:[#allocation5 + $0xd8] sm:$0xff]
        %v347 = vld [vmem:[#allocation5 + $0xe0] sm:$0xff]
        %v348 = vld [vmem:[#allocation5 + $0xe8] sm:$0xff]
        %v349 = vld [vmem:[#allocation5 + $0xf0] sm:$0xff]
        %v350 = vld [vmem:[#allocation5 + $0xf8] sm:$0xff]
        %v351 = vld [vmem:[#allocation5 + $0x100] sm:$0xff]
        %v352 = vld [vmem:[#allocation5 + $0x108] sm:$0xff]
        %v353 = vld [vmem:[#allocation5 + $0x110] sm:$0xff]
        %v354 = vld [vmem:[#allocation5 + $0x118] sm:$0xff]
        %v355 = vld [vmem:[#allocation5 + $0x120] sm:$0xff]
        %v356 = vld [vmem:[#allocation5 + $0x128] sm:$0xff]
        %v357 = vld [vmem:[#allocation5 + $0x130] sm:$0xff]
        %v358 = vld [vmem:[#allocation5 + $0x138] sm:$0xff]
        %v359 = vld [vmem:[#allocation5 + $0x140] sm:$0xff]
        %v360 = vld [vmem:[#allocation5 + $0x148] sm:$0xff]
        %v361 = vld [vmem:[#allocation5 + $0x150] sm:$0xff]
        %v362 = vld [vmem:[#allocation5 + $0x158] sm:$0xff]
        %v363 = vld [vmem:[#allocation5 + $0x160] sm:$0xff]
        %v364 = vld [vmem:[#allocation5 + $0x168] sm:$0xff]
        %v365 = vld [vmem:[#allocation5 + $0x170] sm:$0xff]
        %v366 = vld [vmem:[#allocation5 + $0x178] sm:$0xff]
        %v367 = vld [vmem:[#allocation5 + $0x180] sm:$0xff]
        %v368 = vld [vmem:[#allocation5 + $0x188] sm:$0xff]
        %v369 = vld [vmem:[#allocation5 + $0x190] sm:$0xff]
        %v370 = vld [vmem:[#allocation5 + $0x198] sm:$0xff]
        %v371 = vld [vmem:[#allocation5 + $0x1a0] sm:$0xff]
        %v372 = vld [vmem:[#allocation5 + $0x1a8] sm:$0xff]
        %v373 = vld [vmem:[#allocation5 + $0x1b0] sm:$0xff]
        %v374 = vld [vmem:[#allocation5 + $0x1b8] sm:$0xff]
        %v375 = vld [vmem:[#allocation5 + $0x1c0] sm:$0xff]
        %v376 = vld [vmem:[#allocation5 + $0x1c8] sm:$0xff]
        %v377 = vld [vmem:[#allocation5 + $0x1d0] sm:$0xff]
        %v378 = vld [vmem:[#allocation5 + $0x1d8] sm:$0xff]
        %v379 = vld [vmem:[#allocation5 + $0x1e0] sm:$0xff]
        %v380 = vld [vmem:[#allocation5 + $0x1e8] sm:$0xff]
        %v381 = vld [vmem:[#allocation5 + $0x1f0] sm:$0xff]
        %v382 = vld [vmem:[#allocation5 + $0x1f8] sm:$0xff]
        %v383 = vld [vmem:[#allocation10] ss:$8 sm:$0xf]
        %v385 = vlaneseq
        %v386 = vshrl.u32 %v385, 7
        %v387 = vsub.s32 0, %v386
        %v388 = vrot.slane %v383, %v387
        %v389 = vlaneseq
        %v390 = vshrl.u32 %v389, 7
        %v391 = vsub.s32 1, %v390
        %v392 = vrot.slane %v383, %v391
        %v393 = vlaneseq
        %v394 = vshrl.u32 %v393, 7
        %v395 = vsub.s32 2, %v394
        %v396 = vrot.slane %v383, %v395
        %v397 = vlaneseq
        %v398 = vshrl.u32 %v397, 7
        %v399 = vsub.s32 3, %v398
        %v400 = vrot.slane %v383, %v399
        %v421 = vunpack.c.l.b16 %v303
        %v422 = vunpack.c.h.b16 %v303
        %v423 = vunpack.c.l.b16 %v304
        %v424 = vunpack.c.h.b16 %v304
        %v425 = vunpack.c.l.b16 %v305
        %v426 = vunpack.c.h.b16 %v305
        %v427 = vunpack.c.l.b16 %v306
        %v428 = vunpack.c.h.b16 %v306
        %v429 = vunpack.c.l.b16 %v307
        %v430 = vunpack.c.h.b16 %v307
        %v431 = vunpack.c.l.b16 %v308
        %v432 = vunpack.c.h.b16 %v308
        %v433 = vunpack.c.l.b16 %v309
        %v434 = vunpack.c.h.b16 %v309
        %v435 = vunpack.c.l.b16 %v310
        %v436 = vunpack.c.h.b16 %v310
        %v437 = vunpack.c.l.b16 %v311
        %v438 = vunpack.c.h.b16 %v311
        %v439 = vunpack.c.l.b16 %v312
        %v440 = vunpack.c.h.b16 %v312
        %v441 = vunpack.c.l.b16 %v313
        %v442 = vunpack.c.h.b16 %v313
        %v443 = vunpack.c.l.b16 %v314
        %v444 = vunpack.c.h.b16 %v314
        %v445 = vunpack.c.l.b16 %v315
        %v446 = vunpack.c.h.b16 %v315
        %v447 = vunpack.c.l.b16 %v316
        %v448 = vunpack.c.h.b16 %v316
        %v449 = vunpack.c.l.b16 %v317
        %v450 = vunpack.c.h.b16 %v317
        %v451 = vunpack.c.l.b16 %v318
        %v452 = vunpack.c.h.b16 %v318
        %v453 = vpack.c.b16 %v423, %v421
        %v454 = vpack.c.b16 %v424, %v422
        %v455 = vpack.c.b16 %v427, %v425
        %v456 = vpack.c.b16 %v428, %v426
        %v457 = vpack.c.b16 %v431, %v429
        %v458 = vpack.c.b16 %v432, %v430
        %v459 = vpack.c.b16 %v435, %v433
        %v460 = vpack.c.b16 %v436, %v434
        %v461 = vpack.c.b16 %v439, %v437
        %v462 = vpack.c.b16 %v440, %v438
        %v463 = vpack.c.b16 %v443, %v441
        %v464 = vpack.c.b16 %v444, %v442
        %v465 = vpack.c.b16 %v447, %v445
        %v466 = vpack.c.b16 %v448, %v446
        %v467 = vpack.c.b16 %v451, %v449
        %v468 = vpack.c.b16 %v452, %v450
        %v549 = vunpack.c.l.b16 %v319
        %v550 = vunpack.c.h.b16 %v319
        %v551 = vunpack.c.l.b16 %v320
        %v552 = vunpack.c.h.b16 %v320
        %v553 = vunpack.c.l.b16 %v321
        %v554 = vunpack.c.h.b16 %v321
        %v555 = vunpack.c.l.b16 %v322
        %v556 = vunpack.c.h.b16 %v322
        %v557 = vunpack.c.l.b16 %v323
        %v558 = vunpack.c.h.b16 %v323
        %v559 = vunpack.c.l.b16 %v324
        %v560 = vunpack.c.h.b16 %v324
        %v561 = vunpack.c.l.b16 %v325
        %v562 = vunpack.c.h.b16 %v325
        %v563 = vunpack.c.l.b16 %v326
        %v564 = vunpack.c.h.b16 %v326
        %v565 = vunpack.c.l.b16 %v327
        %v566 = vunpack.c.h.b16 %v327
        %v567 = vunpack.c.l.b16 %v328
        %v568 = vunpack.c.h.b16 %v328
        %v569 = vunpack.c.l.b16 %v329
        %v570 = vunpack.c.h.b16 %v329
        %v571 = vunpack.c.l.b16 %v330
        %v572 = vunpack.c.h.b16 %v330
        %v573 = vunpack.c.l.b16 %v331
        %v574 = vunpack.c.h.b16 %v331
        %v575 = vunpack.c.l.b16 %v332
        %v576 = vunpack.c.h.b16 %v332
        %v577 = vunpack.c.l.b16 %v333
        %v578 = vunpack.c.h.b16 %v333
        %v579 = vunpack.c.l.b16 %v334
        %v580 = vunpack.c.h.b16 %v334
        %v581 = vunpack.c.l.b16 %v335
        %v582 = vunpack.c.h.b16 %v335
        %v583 = vunpack.c.l.b16 %v336
        %v584 = vunpack.c.h.b16 %v336
        %v585 = vunpack.c.l.b16 %v337
        %v586 = vunpack.c.h.b16 %v337
        %v587 = vunpack.c.l.b16 %v338
        %v588 = vunpack.c.h.b16 %v338
        %v589 = vunpack.c.l.b16 %v339
        %v590 = vunpack.c.h.b16 %v339
        %v591 = vunpack.c.l.b16 %v340
        %v592 = vunpack.c.h.b16 %v340
        %v593 = vunpack.c.l.b16 %v341
        %v594 = vunpack.c.h.b16 %v341
        %v595 = vunpack.c.l.b16 %v342
        %v596 = vunpack.c.h.b16 %v342
        %v597 = vunpack.c.l.b16 %v343
        %v598 = vunpack.c.h.b16 %v343
        %v599 = vunpack.c.l.b16 %v344
        %v600 = vunpack.c.h.b16 %v344
        %v601 = vunpack.c.l.b16 %v345
        %v602 = vunpack.c.h.b16 %v345
        %v603 = vunpack.c.l.b16 %v346
        %v604 = vunpack.c.h.b16 %v346
        %v605 = vunpack.c.l.b16 %v347
        %v606 = vunpack.c.h.b16 %v347
        %v607 = vunpack.c.l.b16 %v348
        %v608 = vunpack.c.h.b16 %v348
        %v609 = vunpack.c.l.b16 %v349
        %v610 = vunpack.c.h.b16 %v349
        %v611 = vunpack.c.l.b16 %v350
        %v612 = vunpack.c.h.b16 %v350
        %v613 = vunpack.c.l.b16 %v351
        %v614 = vunpack.c.h.b16 %v351
        %v615 = vunpack.c.l.b16 %v352
        %v616 = vunpack.c.h.b16 %v352
        %v617 = vunpack.c.l.b16 %v353
        %v618 = vunpack.c.h.b16 %v353
        %v619 = vunpack.c.l.b16 %v354
        %v620 = vunpack.c.h.b16 %v354
        %v621 = vunpack.c.l.b16 %v355
        %v622 = vunpack.c.h.b16 %v355
        %v623 = vunpack.c.l.b16 %v356
        %v624 = vunpack.c.h.b16 %v356
        %v625 = vunpack.c.l.b16 %v357
        %v626 = vunpack.c.h.b16 %v357
        %v627 = vunpack.c.l.b16 %v358
        %v628 = vunpack.c.h.b16 %v358
        %v629 = vunpack.c.l.b16 %v359
        %v630 = vunpack.c.h.b16 %v359
        %v631 = vunpack.c.l.b16 %v360
        %v632 = vunpack.c.h.b16 %v360
        %v633 = vunpack.c.l.b16 %v361
        %v634 = vunpack.c.h.b16 %v361
        %v635 = vunpack.c.l.b16 %v362
        %v636 = vunpack.c.h.b16 %v362
        %v637 = vunpack.c.l.b16 %v363
        %v638 = vunpack.c.h.b16 %v363
        %v639 = vunpack.c.l.b16 %v364
        %v640 = vunpack.c.h.b16 %v364
        %v641 = vunpack.c.l.b16 %v365
        %v642 = vunpack.c.h.b16 %v365
        %v643 = vunpack.c.l.b16 %v366
        %v644 = vunpack.c.h.b16 %v366
        %v645 = vunpack.c.l.b16 %v367
        %v646 = vunpack.c.h.b16 %v367
        %v647 = vunpack.c.l.b16 %v368
        %v648 = vunpack.c.h.b16 %v368
        %v649 = vunpack.c.l.b16 %v369
        %v650 = vunpack.c.h.b16 %v369
        %v651 = vunpack.c.l.b16 %v370
        %v652 = vunpack.c.h.b16 %v370
        %v653 = vunpack.c.l.b16 %v371
        %v654 = vunpack.c.h.b16 %v371
        %v655 = vunpack.c.l.b16 %v372
        %v656 = vunpack.c.h.b16 %v372
        %v657 = vunpack.c.l.b16 %v373
        %v658 = vunpack.c.h.b16 %v373
        %v659 = vunpack.c.l.b16 %v374
        %v660 = vunpack.c.h.b16 %v374
        %v661 = vunpack.c.l.b16 %v375
        %v662 = vunpack.c.h.b16 %v375
        %v663 = vunpack.c.l.b16 %v376
        %v664 = vunpack.c.h.b16 %v376
        %v665 = vunpack.c.l.b16 %v377
        %v666 = vunpack.c.h.b16 %v377
        %v667 = vunpack.c.l.b16 %v378
        %v668 = vunpack.c.h.b16 %v378
        %v669 = vunpack.c.l.b16 %v379
        %v670 = vunpack.c.h.b16 %v379
        %v671 = vunpack.c.l.b16 %v380
        %v672 = vunpack.c.h.b16 %v380
        %v673 = vunpack.c.l.b16 %v381
        %v674 = vunpack.c.h.b16 %v381
        %v675 = vunpack.c.l.b16 %v382
        %v676 = vunpack.c.h.b16 %v382
        %v677 = vpack.c.b16 %v553, %v549
        %v678 = vpack.c.b16 %v554, %v550
        %v679 = vpack.c.b16 %v555, %v551
        %v680 = vpack.c.b16 %v556, %v552
        %v681 = vpack.c.b16 %v561, %v557
        %v682 = vpack.c.b16 %v562, %v558
        %v683 = vpack.c.b16 %v563, %v559
        %v684 = vpack.c.b16 %v564, %v560
        %v685 = vpack.c.b16 %v569, %v565
        %v686 = vpack.c.b16 %v570, %v566
        %v687 = vpack.c.b16 %v571, %v567
        %v688 = vpack.c.b16 %v572, %v568
        %v689 = vpack.c.b16 %v577, %v573
        %v690 = vpack.c.b16 %v578, %v574
        %v691 = vpack.c.b16 %v579, %v575
        %v692 = vpack.c.b16 %v580, %v576
        %v693 = vpack.c.b16 %v585, %v581
        %v694 = vpack.c.b16 %v586, %v582
        %v695 = vpack.c.b16 %v587, %v583
        %v696 = vpack.c.b16 %v588, %v584
        %v697 = vpack.c.b16 %v593, %v589
        %v698 = vpack.c.b16 %v594, %v590
        %v699 = vpack.c.b16 %v595, %v591
        %v700 = vpack.c.b16 %v596, %v592
        %v701 = vpack.c.b16 %v601, %v597
        %v702 = vpack.c.b16 %v602, %v598
        %v703 = vpack.c.b16 %v603, %v599
        %v704 = vpack.c.b16 %v604, %v600
        %v705 = vpack.c.b16 %v609, %v605
        %v706 = vpack.c.b16 %v610, %v606
        %v707 = vpack.c.b16 %v611, %v607
        %v708 = vpack.c.b16 %v612, %v608
        %v709 = vpack.c.b16 %v617, %v613
        %v710 = vpack.c.b16 %v618, %v614
        %v711 = vpack.c.b16 %v619, %v615
        %v712 = vpack.c.b16 %v620, %v616
        %v713 = vpack.c.b16 %v625, %v621
        %v714 = vpack.c.b16 %v626, %v622
        %v715 = vpack.c.b16 %v627, %v623
        %v716 = vpack.c.b16 %v628, %v624
        %v717 = vpack.c.b16 %v633, %v629
        %v718 = vpack.c.b16 %v634, %v630
        %v719 = vpack.c.b16 %v635, %v631
        %v720 = vpack.c.b16 %v636, %v632
        %v721 = vpack.c.b16 %v641, %v637
        %v722 = vpack.c.b16 %v642, %v638
        %v723 = vpack.c.b16 %v643, %v639
        %v724 = vpack.c.b16 %v644, %v640
        %v725 = vpack.c.b16 %v649, %v645
        %v726 = vpack.c.b16 %v650, %v646
        %v727 = vpack.c.b16 %v651, %v647
        %v728 = vpack.c.b16 %v652, %v648
        %v729 = vpack.c.b16 %v657, %v653
        %v730 = vpack.c.b16 %v658, %v654
        %v731 = vpack.c.b16 %v659, %v655
        %v732 = vpack.c.b16 %v660, %v656
        %v733 = vpack.c.b16 %v665, %v661
        %v734 = vpack.c.b16 %v666, %v662
        %v735 = vpack.c.b16 %v667, %v663
        %v736 = vpack.c.b16 %v668, %v664
        %v737 = vpack.c.b16 %v673, %v669
        %v738 = vpack.c.b16 %v674, %v670
        %v739 = vpack.c.b16 %v675, %v671
        %v740 = vpack.c.b16 %v676, %v672
        %805 = vmatprep.subr.bf16.mxu0 %v678
        %806 = vmatpush1.bf16.msra.mxu0 %v677
        %807 = vmatprep.subr.bf16.mxu0 %v682
        %808 = vmatpush1.bf16.msra.mxu0 %v681
        %809 = vmatprep.subr.bf16.mxu0 %v686
        %810 = vmatpush1.bf16.msra.mxu0 %v685
        %811 = vmatprep.subr.bf16.mxu0 %v690
        %812 = vmatpush1.bf16.msra.mxu0 %v689
        %813 = vmatprep.subr.bf16.mxu0 %v694
        %814 = vmatpush1.bf16.msra.mxu0 %v693
        %815 = vmatprep.subr.bf16.mxu0 %v698
        %816 = vmatpush1.bf16.msra.mxu0 %v697
        %817 = vmatprep.subr.bf16.mxu0 %v702
        %818 = vmatpush1.bf16.msra.mxu0 %v701
        %819 = vmatprep.subr.bf16.mxu0 %v706
        %820 = vmatpush1.bf16.msra.mxu0 %v705
        %821 = vmatprep.subr.bf16.mxu0 %v710
        %822 = vmatpush1.bf16.msra.mxu0 %v709
        %823 = vmatprep.subr.bf16.mxu0 %v714
        %824 = vmatpush1.bf16.msra.mxu0 %v713
        %825 = vmatprep.subr.bf16.mxu0 %v718
        %826 = vmatpush1.bf16.msra.mxu0 %v717
        %827 = vmatprep.subr.bf16.mxu0 %v722
        %828 = vmatpush1.bf16.msra.mxu0 %v721
        %829 = vmatprep.subr.bf16.mxu0 %v726
        %830 = vmatpush1.bf16.msra.mxu0 %v725
        %831 = vmatprep.subr.bf16.mxu0 %v730
        %832 = vmatpush1.bf16.msra.mxu0 %v729
        %833 = vmatprep.subr.bf16.mxu0 %v734
        %834 = vmatpush1.bf16.msra.mxu0 %v733
        %835 = vmatprep.subr.bf16.mxu0 %v738
        %836 = vmatpush1.bf16.msra.mxu0 %v737
        %837 = vmatprep.mubr.bf16.mxu0 %v454
        %838 = vmatmul.mubr.bf16.gmra.mrb[0].mxu0 %v453
        %v839 = vpop.f32.mrb[0].mxu0
        %v840 = vadd.f32 %v388, %v839
        %v841 = vpop.f32.mrb[0].mxu0
        %v842 = vadd.f32 %v392, %v841
        %v843 = vpop.f32.mrb[0].mxu0
        %v844 = vadd.f32 %v388, %v843
        %v845 = vpop.f32.mrb[0].mxu0
        %v846 = vadd.f32 %v392, %v845
        %847 = vmatprep.mubr.bf16.mxu0 %v456
        %848 = vmatmul.mubr.bf16.gmra.mrb[0].mxu0 %v455
        %v849 = vpop.f32.mrb[0].mxu0
        %v850 = vadd.f32 %v388, %v849
        %v851 = vpop.f32.mrb[0].mxu0
        %v852 = vadd.f32 %v392, %v851
        %v853 = vpop.f32.mrb[0].mxu0
        %v854 = vadd.f32 %v388, %v853
        %v855 = vpop.f32.mrb[0].mxu0
        %v856 = vadd.f32 %v392, %v855
        %857 = vmatprep.mubr.bf16.mxu0 %v458
        %858 = vmatmul.mubr.bf16.gmra.mrb[0].mxu0 %v457
        %v859 = vpop.f32.mrb[0].mxu0
        %v860 = vadd.f32 %v388, %v859
        %v861 = vpop.f32.mrb[0].mxu0
        %v862 = vadd.f32 %v392, %v861
        %v863 = vpop.f32.mrb[0].mxu0
        %v864 = vadd.f32 %v388, %v863
        %v865 = vpop.f32.mrb[0].mxu0
        %v866 = vadd.f32 %v392, %v865
        %867 = vmatprep.mubr.bf16.mxu0 %v460
        %868 = vmatmul.mubr.bf16.gmra.mrb[0].mxu0 %v459
        %v869 = vpop.f32.mrb[0].mxu0
        %v870 = vadd.f32 %v388, %v869
        %v871 = vpop.f32.mrb[0].mxu0
        %v872 = vadd.f32 %v392, %v871
        %v873 = vpop.f32.mrb[0].mxu0
        %v874 = vadd.f32 %v388, %v873
        %v875 = vpop.f32.mrb[0].mxu0
        %v876 = vadd.f32 %v392, %v875
        %877 = vmatprep.mubr.bf16.mxu0 %v462
        %878 = vmatmul.mubr.bf16.gmra.mrb[0].mxu0 %v461
        %v879 = vpop.f32.mrb[0].mxu0
        %v880 = vadd.f32 %v388, %v879
        %v881 = vpop.f32.mrb[0].mxu0
        %v882 = vadd.f32 %v392, %v881
        %v883 = vpop.f32.mrb[0].mxu0
        %v884 = vadd.f32 %v388, %v883
        %v885 = vpop.f32.mrb[0].mxu0
        %v886 = vadd.f32 %v392, %v885
        %887 = vmatprep.mubr.bf16.mxu0 %v464
        %888 = vmatmul.mubr.bf16.gmra.mrb[0].mxu0 %v463
        %v889 = vpop.f32.mrb[0].mxu0
        %v890 = vadd.f32 %v388, %v889
        %v891 = vpop.f32.mrb[0].mxu0
        %v892 = vadd.f32 %v392, %v891
        %v893 = vpop.f32.mrb[0].mxu0
        %v894 = vadd.f32 %v388, %v893
        %v895 = vpop.f32.mrb[0].mxu0
        %v896 = vadd.f32 %v392, %v895
        %897 = vmatprep.mubr.bf16.mxu0 %v466
        %898 = vmatmul.mubr.bf16.gmra.mrb[0].mxu0 %v465
        %v899 = vpop.f32.mrb[0].mxu0
        %v900 = vadd.f32 %v388, %v899
        %v901 = vpop.f32.mrb[0].mxu0
        %v902 = vadd.f32 %v392, %v901
        %v903 = vpop.f32.mrb[0].mxu0
        %v904 = vadd.f32 %v388, %v903
        %v905 = vpop.f32.mrb[0].mxu0
        %v906 = vadd.f32 %v392, %v905
        %907 = vmatprep.mubr.bf16.mxu0 %v468
        %908 = vmatmul.mubr.bf16.gmra.mrb[0].mxu0 %v467
        %v909 = vpop.f32.mrb[0].mxu0
        %v910 = vadd.f32 %v388, %v909
        %v911 = vpop.f32.mrb[0].mxu0
        %v912 = vadd.f32 %v392, %v911
        %v913 = vpop.f32.mrb[0].mxu0
        %v914 = vadd.f32 %v388, %v913
        %v915 = vpop.f32.mrb[0].mxu0
        %v916 = vadd.f32 %v392, %v915
        %917 = vdwg.mxu0
        %918 = vmatprep.subr.bf16.mxu0 %v680
        %919 = vmatpush1.bf16.msra.mxu0 %v679
        %920 = vmatprep.subr.bf16.mxu0 %v684
        %921 = vmatpush1.bf16.msra.mxu0 %v683
        %922 = vmatprep.subr.bf16.mxu0 %v688
        %923 = vmatpush1.bf16.msra.mxu0 %v687
        %924 = vmatprep.subr.bf16.mxu0 %v692
        %925 = vmatpush1.bf16.msra.mxu0 %v691
        %926 = vmatprep.subr.bf16.mxu0 %v696
        %927 = vmatpush1.bf16.msra.mxu0 %v695
        %928 = vmatprep.subr.bf16.mxu0 %v700
        %929 = vmatpush1.bf16.msra.mxu0 %v699
        %930 = vmatprep.subr.bf16.mxu0 %v704
        %931 = vmatpush1.bf16.msra.mxu0 %v703
        %932 = vmatprep.subr.bf16.mxu0 %v708
        %933 = vmatpush1.bf16.msra.mxu0 %v707
        %934 = vmatprep.subr.bf16.mxu0 %v712
        %935 = vmatpush1.bf16.msra.mxu0 %v711
        %936 = vmatprep.subr.bf16.mxu0 %v716
        %937 = vmatpush1.bf16.msra.mxu0 %v715
        %938 = vmatprep.subr.bf16.mxu0 %v720
        %939 = vmatpush1.bf16.msra.mxu0 %v719
        %940 = vmatprep.subr.bf16.mxu0 %v724
        %941 = vmatpush1.bf16.msra.mxu0 %v723
        %942 = vmatprep.subr.bf16.mxu0 %v728
        %943 = vmatpush1.bf16.msra.mxu0 %v727
        %944 = vmatprep.subr.bf16.mxu0 %v732
        %945 = vmatpush1.bf16.msra.mxu0 %v731
        %946 = vmatprep.subr.bf16.mxu0 %v736
        %947 = vmatpush1.bf16.msra.mxu0 %v735
        %948 = vmatprep.subr.bf16.mxu0 %v740
        %949 = vmatpush1.bf16.msra.mxu0 %v739
        %950 = vmatprep.mubr.bf16.mxu0 %v454
        %951 = vmatmul.mubr.bf16.gmra.mrb[0].mxu0 %v453
        %v952 = vpop.f32.mrb[0].mxu0
        %v953 = vadd.f32 %v396, %v952
        %v954 = vpop.f32.mrb[0].mxu0
        %v955 = vadd.f32 %v400, %v954
        %v956 = vpop.f32.mrb[0].mxu0
        %v957 = vadd.f32 %v396, %v956
        %v958 = vpop.f32.mrb[0].mxu0
        %v959 = vadd.f32 %v400, %v958
        %960 = vmatprep.mubr.bf16.mxu0 %v456
        %961 = vmatmul.mubr.bf16.gmra.mrb[0].mxu0 %v455
        %v962 = vpop.f32.mrb[0].mxu0
        %v963 = vadd.f32 %v396, %v962
        %v964 = vpop.f32.mrb[0].mxu0
        %v965 = vadd.f32 %v400, %v964
        %v966 = vpop.f32.mrb[0].mxu0
        %v967 = vadd.f32 %v396, %v966
        %v968 = vpop.f32.mrb[0].mxu0
        %v969 = vadd.f32 %v400, %v968
        %970 = vmatprep.mubr.bf16.mxu0 %v458
        %971 = vmatmul.mubr.bf16.gmra.mrb[0].mxu0 %v457
        %v972 = vpop.f32.mrb[0].mxu0
        %v973 = vadd.f32 %v396, %v972
        %v974 = vpop.f32.mrb[0].mxu0
        %v975 = vadd.f32 %v400, %v974
        %v976 = vpop.f32.mrb[0].mxu0
        %v977 = vadd.f32 %v396, %v976
        %v978 = vpop.f32.mrb[0].mxu0
        %v979 = vadd.f32 %v400, %v978
        %980 = vmatprep.mubr.bf16.mxu0 %v460
        %981 = vmatmul.mubr.bf16.gmra.mrb[0].mxu0 %v459
        %v982 = vpop.f32.mrb[0].mxu0
        %v983 = vadd.f32 %v396, %v982
        %v984 = vpop.f32.mrb[0].mxu0
        %v985 = vadd.f32 %v400, %v984
        %v986 = vpop.f32.mrb[0].mxu0
        %v987 = vadd.f32 %v396, %v986
        %v988 = vpop.f32.mrb[0].mxu0
        %v989 = vadd.f32 %v400, %v988
        %990 = vmatprep.mubr.bf16.mxu0 %v462
        %991 = vmatmul.mubr.bf16.gmra.mrb[0].mxu0 %v461
        %v992 = vpop.f32.mrb[0].mxu0
        %v993 = vadd.f32 %v396, %v992
        %v994 = vpop.f32.mrb[0].mxu0
        %v995 = vadd.f32 %v400, %v994
        %v996 = vpop.f32.mrb[0].mxu0
        %v997 = vadd.f32 %v396, %v996
        %v998 = vpop.f32.mrb[0].mxu0
        %v999 = vadd.f32 %v400, %v998
        %1000 = vmatprep.mubr.bf16.mxu0 %v464
        %1001 = vmatmul.mubr.bf16.gmra.mrb[0].mxu0 %v463
        %v1002 = vpop.f32.mrb[0].mxu0
        %v1003 = vadd.f32 %v396, %v1002
        %v1004 = vpop.f32.mrb[0].mxu0
        %v1005 = vadd.f32 %v400, %v1004
        %v1006 = vpop.f32.mrb[0].mxu0
        %v1007 = vadd.f32 %v396, %v1006
        %v1008 = vpop.f32.mrb[0].mxu0
        %v1009 = vadd.f32 %v400, %v1008
        %1010 = vmatprep.mubr.bf16.mxu0 %v466
        %1011 = vmatmul.mubr.bf16.gmra.mrb[0].mxu0 %v465
        %v1012 = vpop.f32.mrb[0].mxu0
        %v1013 = vadd.f32 %v396, %v1012
        %v1014 = vpop.f32.mrb[0].mxu0
        %v1015 = vadd.f32 %v400, %v1014
        %v1016 = vpop.f32.mrb[0].mxu0
        %v1017 = vadd.f32 %v396, %v1016
        %v1018 = vpop.f32.mrb[0].mxu0
        %v1019 = vadd.f32 %v400, %v1018
        %1020 = vmatprep.mubr.bf16.mxu0 %v468
        %1021 = vmatmul.mubr.bf16.gmra.mrb[0].mxu0 %v467
        %v1022 = vpop.f32.mrb[0].mxu0
        %v1023 = vadd.f32 %v396, %v1022
        %v1024 = vpop.f32.mrb[0].mxu0
        %v1025 = vadd.f32 %v400, %v1024
        %v1026 = vpop.f32.mrb[0].mxu0
        %v1027 = vadd.f32 %v396, %v1026
        %v1028 = vpop.f32.mrb[0].mxu0
        %v1029 = vadd.f32 %v400, %v1028
        %1030 = vdwg.mxu0
        %v1031 = vmul.f32 %v840, 0.01
        %v1032 = vmul.f32 %v842, 0.01
        %v1033 = vmul.f32 %v953, 0.01
        %v1034 = vmul.f32 %v955, 0.01
        %v1035 = vmul.f32 %v844, 0.01
        %v1036 = vmul.f32 %v846, 0.01
        %v1037 = vmul.f32 %v957, 0.01
        %v1038 = vmul.f32 %v959, 0.01
        %v1039 = vmul.f32 %v850, 0.01
        %v1040 = vmul.f32 %v852, 0.01
        %v1041 = vmul.f32 %v963, 0.01
        %v1042 = vmul.f32 %v965, 0.01
        %v1043 = vmul.f32 %v854, 0.01
        %v1044 = vmul.f32 %v856, 0.01
        %v1045 = vmul.f32 %v967, 0.01
        %v1046 = vmul.f32 %v969, 0.01
        %v1047 = vmul.f32 %v860, 0.01
        %v1048 = vmul.f32 %v862, 0.01
        %v1049 = vmul.f32 %v973, 0.01
        %v1050 = vmul.f32 %v975, 0.01
        %v1051 = vmul.f32 %v864, 0.01
        %v1052 = vmul.f32 %v866, 0.01
        %v1053 = vmul.f32 %v977, 0.01
        %v1054 = vmul.f32 %v979, 0.01
        %v1055 = vmul.f32 %v870, 0.01
        %v1056 = vmul.f32 %v872, 0.01
        %v1057 = vmul.f32 %v983, 0.01
        %v1058 = vmul.f32 %v985, 0.01
        %v1059 = vmul.f32 %v874, 0.01
        %v1060 = vmul.f32 %v876, 0.01
        %v1061 = vmul.f32 %v987, 0.01
        %v1062 = vmul.f32 %v989, 0.01
        %v1063 = vmul.f32 %v880, 0.01
        %v1064 = vmul.f32 %v882, 0.01
        %v1065 = vmul.f32 %v993, 0.01
        %v1066 = vmul.f32 %v995, 0.01
        %v1067 = vmul.f32 %v884, 0.01
        %v1068 = vmul.f32 %v886, 0.01
        %v1069 = vmul.f32 %v997, 0.01
        %v1070 = vmul.f32 %v999, 0.01
        %v1071 = vmul.f32 %v890, 0.01
        %v1072 = vmul.f32 %v892, 0.01
        %v1073 = vmul.f32 %v1003, 0.01
        %v1074 = vmul.f32 %v1005, 0.01
        %v1075 = vmul.f32 %v894, 0.01
        %v1076 = vmul.f32 %v896, 0.01
        %v1077 = vmul.f32 %v1007, 0.01
        %v1078 = vmul.f32 %v1009, 0.01
        %v1079 = vmul.f32 %v900, 0.01
        %v1080 = vmul.f32 %v902, 0.01
        %v1081 = vmul.f32 %v1013, 0.01
        %v1082 = vmul.f32 %v1015, 0.01
        %v1083 = vmul.f32 %v904, 0.01
        %v1084 = vmul.f32 %v906, 0.01
        %v1085 = vmul.f32 %v1017, 0.01
        %v1086 = vmul.f32 %v1019, 0.01
        %v1087 = vmul.f32 %v910, 0.01
        %v1088 = vmul.f32 %v912, 0.01
        %v1089 = vmul.f32 %v1023, 0.01
        %v1090 = vmul.f32 %v1025, 0.01
        %v1091 = vmul.f32 %v914, 0.01
        %v1092 = vmul.f32 %v916, 0.01
        %v1093 = vmul.f32 %v1027, 0.01
        %v1094 = vmul.f32 %v1029, 0.01
        %v1095 = vmax.f32 %v840, %v1031
        %v1096 = vmax.f32 %v842, %v1032
        %v1097 = vmax.f32 %v953, %v1033
        %v1098 = vmax.f32 %v955, %v1034
        %v1099 = vmax.f32 %v844, %v1035
        %v1100 = vmax.f32 %v846, %v1036
        %v1101 = vmax.f32 %v957, %v1037
        %v1102 = vmax.f32 %v959, %v1038
        %v1103 = vmax.f32 %v850, %v1039
        %v1104 = vmax.f32 %v852, %v1040
        %v1105 = vmax.f32 %v963, %v1041
        %v1106 = vmax.f32 %v965, %v1042
        %v1107 = vmax.f32 %v854, %v1043
        %v1108 = vmax.f32 %v856, %v1044
        %v1109 = vmax.f32 %v967, %v1045
        %v1110 = vmax.f32 %v969, %v1046
        %v1111 = vmax.f32 %v860, %v1047
        %v1112 = vmax.f32 %v862, %v1048
        %v1113 = vmax.f32 %v973, %v1049
        %v1114 = vmax.f32 %v975, %v1050
        %v1115 = vmax.f32 %v864, %v1051
        %v1116 = vmax.f32 %v866, %v1052
        %v1117 = vmax.f32 %v977, %v1053
        %v1118 = vmax.f32 %v979, %v1054
        %v1119 = vmax.f32 %v870, %v1055
        %v1120 = vmax.f32 %v872, %v1056
        %v1121 = vmax.f32 %v983, %v1057
        %v1122 = vmax.f32 %v985, %v1058
        %v1123 = vmax.f32 %v874, %v1059
        %v1124 = vmax.f32 %v876, %v1060
        %v1125 = vmax.f32 %v987, %v1061
        %v1126 = vmax.f32 %v989, %v1062
        %v1127 = vmax.f32 %v880, %v1063
        %v1128 = vmax.f32 %v882, %v1064
        %v1129 = vmax.f32 %v993, %v1065
        %v1130 = vmax.f32 %v995, %v1066
        %v1131 = vmax.f32 %v884, %v1067
        %v1132 = vmax.f32 %v886, %v1068
        %v1133 = vmax.f32 %v997, %v1069
        %v1134 = vmax.f32 %v999, %v1070
        %v1135 = vmax.f32 %v890, %v1071
        %v1136 = vmax.f32 %v892, %v1072
        %v1137 = vmax.f32 %v1003, %v1073
        %v1138 = vmax.f32 %v1005, %v1074
        %v1139 = vmax.f32 %v894, %v1075
        %v1140 = vmax.f32 %v896, %v1076
        %v1141 = vmax.f32 %v1007, %v1077
        %v1142 = vmax.f32 %v1009, %v1078
        %v1143 = vmax.f32 %v900, %v1079
        %v1144 = vmax.f32 %v902, %v1080
        %v1145 = vmax.f32 %v1013, %v1081
        %v1146 = vmax.f32 %v1015, %v1082
        %v1147 = vmax.f32 %v904, %v1083
        %v1148 = vmax.f32 %v906, %v1084
        %v1149 = vmax.f32 %v1017, %v1085
        %v1150 = vmax.f32 %v1019, %v1086
        %v1151 = vmax.f32 %v910, %v1087
        %v1152 = vmax.f32 %v912, %v1088
        %v1153 = vmax.f32 %v1023, %v1089
        %v1154 = vmax.f32 %v1025, %v1090
        %v1155 = vmax.f32 %v914, %v1091
        %v1156 = vmax.f32 %v916, %v1092
        %v1157 = vmax.f32 %v1027, %v1093
        %v1158 = vmax.f32 %v1029, %v1094
        %v1159 = vld [vmem:[#allocation7] sm:$0xff]
        %v1160 = vld [vmem:[#allocation7 + $0x8] sm:$0xff]
        %v1161 = vld [vmem:[#allocation7 + $0x10] sm:$0xff]
        %v1162 = vld [vmem:[#allocation7 + $0x18] sm:$0xff]
        %v1163 = vld [vmem:[#allocation7 + $0x20] sm:$0xff]
        %v1164 = vld [vmem:[#allocation7 + $0x28] sm:$0xff]
        %v1165 = vld [vmem:[#allocation7 + $0x30] sm:$0xff]
        %v1166 = vld [vmem:[#allocation7 + $0x38] sm:$0xff]
        %v1167 = vld [vmem:[#allocation7 + $0x40] sm:$0xff]
        %v1168 = vld [vmem:[#allocation7 + $0x48] sm:$0xff]
        %v1169 = vld [vmem:[#allocation7 + $0x50] sm:$0xff]
        %v1170 = vld [vmem:[#allocation7 + $0x58] sm:$0xff]
        %v1171 = vld [vmem:[#allocation7 + $0x60] sm:$0xff]
        %v1172 = vld [vmem:[#allocation7 + $0x68] sm:$0xff]
        %v1173 = vld [vmem:[#allocation7 + $0x70] sm:$0xff]
        %v1174 = vld [vmem:[#allocation7 + $0x78] sm:$0xff]
        %v1175 = vld [vmem:[#allocation7 + $0x80] sm:$0xff]
        %v1176 = vld [vmem:[#allocation7 + $0x88] sm:$0xff]
        %v1177 = vld [vmem:[#allocation7 + $0x90] sm:$0xff]
        %v1178 = vld [vmem:[#allocation7 + $0x98] sm:$0xff]
        %v1179 = vld [vmem:[#allocation7 + $0xa0] sm:$0xff]
        %v1180 = vld [vmem:[#allocation7 + $0xa8] sm:$0xff]
        %v1181 = vld [vmem:[#allocation7 + $0xb0] sm:$0xff]
        %v1182 = vld [vmem:[#allocation7 + $0xb8] sm:$0xff]
        %v1183 = vld [vmem:[#allocation7 + $0xc0] sm:$0xff]
        %v1184 = vld [vmem:[#allocation7 + $0xc8] sm:$0xff]
        %v1185 = vld [vmem:[#allocation7 + $0xd0] sm:$0xff]
        %v1186 = vld [vmem:[#allocation7 + $0xd8] sm:$0xff]
        %v1187 = vld [vmem:[#allocation7 + $0xe0] sm:$0xff]
        %v1188 = vld [vmem:[#allocation7 + $0xe8] sm:$0xff]
        %v1189 = vld [vmem:[#allocation7 + $0xf0] sm:$0xff]
        %v1190 = vld [vmem:[#allocation7 + $0xf8] sm:$0xff]
        %v1191 = vld [vmem:[#allocation7 + $0x100] sm:$0xff]
        %v1192 = vld [vmem:[#allocation7 + $0x108] sm:$0xff]
        %v1193 = vld [vmem:[#allocation7 + $0x110] sm:$0xff]
        %v1194 = vld [vmem:[#allocation7 + $0x118] sm:$0xff]
        %v1195 = vld [vmem:[#allocation7 + $0x120] sm:$0xff]
        %v1196 = vld [vmem:[#allocation7 + $0x128] sm:$0xff]
        %v1197 = vld [vmem:[#allocation7 + $0x130] sm:$0xff]
        %v1198 = vld [vmem:[#allocation7 + $0x138] sm:$0xff]
        %v1199 = vld [vmem:[#allocation7 + $0x140] sm:$0xff]
        %v1200 = vld [vmem:[#allocation7 + $0x148] sm:$0xff]
        %v1201 = vld [vmem:[#allocation7 + $0x150] sm:$0xff]
        %v1202 = vld [vmem:[#allocation7 + $0x158] sm:$0xff]
        %v1203 = vld [vmem:[#allocation7 + $0x160] sm:$0xff]
        %v1204 = vld [vmem:[#allocation7 + $0x168] sm:$0xff]
        %v1205 = vld [vmem:[#allocation7 + $0x170] sm:$0xff]
        %v1206 = vld [vmem:[#allocation7 + $0x178] sm:$0xff]
        %v1207 = vld [vmem:[#allocation7 + $0x180] sm:$0xff]
        %v1208 = vld [vmem:[#allocation7 + $0x188] sm:$0xff]
        %v1209 = vld [vmem:[#allocation7 + $0x190] sm:$0xff]
        %v1210 = vld [vmem:[#allocation7 + $0x198] sm:$0xff]
        %v1211 = vld [vmem:[#allocation7 + $0x1a0] sm:$0xff]
        %v1212 = vld [vmem:[#allocation7 + $0x1a8] sm:$0xff]
        %v1213 = vld [vmem:[#allocation7 + $0x1b0] sm:$0xff]
        %v1214 = vld [vmem:[#allocation7 + $0x1b8] sm:$0xff]
        %v1215 = vld [vmem:[#allocation7 + $0x1c0] sm:$0xff]
        %v1216 = vld [vmem:[#allocation7 + $0x1c8] sm:$0xff]
        %v1217 = vld [vmem:[#allocation7 + $0x1d0] sm:$0xff]
        %v1218 = vld [vmem:[#allocation7 + $0x1d8] sm:$0xff]
        %v1219 = vld [vmem:[#allocation7 + $0x1e0] sm:$0xff]
        %v1220 = vld [vmem:[#allocation7 + $0x1e8] sm:$0xff]
        %v1221 = vld [vmem:[#allocation7 + $0x1f0] sm:$0xff]
        %v1222 = vld [vmem:[#allocation7 + $0x1f8] sm:$0xff]
        %s1223 = scalar_lea.vmem [#allocation10], 1
        %v1224 = vld [vmem:[%s1223] ss:$8 sm:$0x3]
        %v1225 = vpack.c.bf16 %v1099, %v1095
        %v1226 = vpack.c.bf16 %v1100, %v1096
        %v1227 = vpack.c.bf16 %v1101, %v1097
        %v1228 = vpack.c.bf16 %v1102, %v1098
        %v1229 = vpack.c.bf16 %v1107, %v1103
        %v1230 = vpack.c.bf16 %v1108, %v1104
        %v1231 = vpack.c.bf16 %v1109, %v1105
        %v1232 = vpack.c.bf16 %v1110, %v1106
        %v1233 = vpack.c.bf16 %v1115, %v1111
        %v1234 = vpack.c.bf16 %v1116, %v1112
        %v1235 = vpack.c.bf16 %v1117, %v1113
        %v1236 = vpack.c.bf16 %v1118, %v1114
        %v1237 = vpack.c.bf16 %v1123, %v1119
        %v1238 = vpack.c.bf16 %v1124, %v1120
        %v1239 = vpack.c.bf16 %v1125, %v1121
        %v1240 = vpack.c.bf16 %v1126, %v1122
        %v1241 = vpack.c.bf16 %v1131, %v1127
        %v1242 = vpack.c.bf16 %v1132, %v1128
        %v1243 = vpack.c.bf16 %v1133, %v1129
        %v1244 = vpack.c.bf16 %v1134, %v1130
        %v1245 = vpack.c.bf16 %v1139, %v1135
        %v1246 = vpack.c.bf16 %v1140, %v1136
        %v1247 = vpack.c.bf16 %v1141, %v1137
        %v1248 = vpack.c.bf16 %v1142, %v1138
        %v1249 = vpack.c.bf16 %v1147, %v1143
        %v1250 = vpack.c.bf16 %v1148, %v1144
        %v1251 = vpack.c.bf16 %v1149, %v1145
        %v1252 = vpack.c.bf16 %v1150, %v1146
        %v1253 = vpack.c.bf16 %v1155, %v1151
        %v1254 = vpack.c.bf16 %v1156, %v1152
        %v1255 = vpack.c.bf16 %v1157, %v1153
        %v1256 = vpack.c.bf16 %v1158, %v1154
        %v1258 = vlaneseq
        %v1259 = vshrl.u32 %v1258, 7
        %v1260 = vsub.s32 0, %v1259
        %v1261 = vrot.slane %v1224, %v1260
        %v1262 = vlaneseq
        %v1263 = vshrl.u32 %v1262, 7
        %v1264 = vsub.s32 1, %v1263
        %v1265 = vrot.slane %v1224, %v1264
        %v1332 = vunpack.c.l.b16 %v1159
        %v1333 = vunpack.c.h.b16 %v1159
        %v1334 = vunpack.c.l.b16 %v1160
        %v1335 = vunpack.c.h.b16 %v1160
        %v1336 = vunpack.c.l.b16 %v1161
        %v1337 = vunpack.c.h.b16 %v1161
        %v1338 = vunpack.c.l.b16 %v1162
        %v1339 = vunpack.c.h.b16 %v1162
        %v1340 = vunpack.c.l.b16 %v1163
        %v1341 = vunpack.c.h.b16 %v1163
        %v1342 = vunpack.c.l.b16 %v1164
        %v1343 = vunpack.c.h.b16 %v1164
        %v1344 = vunpack.c.l.b16 %v1165
        %v1345 = vunpack.c.h.b16 %v1165
        %v1346 = vunpack.c.l.b16 %v1166
        %v1347 = vunpack.c.h.b16 %v1166
        %v1348 = vunpack.c.l.b16 %v1167
        %v1349 = vunpack.c.h.b16 %v1167
        %v1350 = vunpack.c.l.b16 %v1168
        %v1351 = vunpack.c.h.b16 %v1168
        %v1352 = vunpack.c.l.b16 %v1169
        %v1353 = vunpack.c.h.b16 %v1169
        %v1354 = vunpack.c.l.b16 %v1170
        %v1355 = vunpack.c.h.b16 %v1170
        %v1356 = vunpack.c.l.b16 %v1171
        %v1357 = vunpack.c.h.b16 %v1171
        %v1358 = vunpack.c.l.b16 %v1172
        %v1359 = vunpack.c.h.b16 %v1172
        %v1360 = vunpack.c.l.b16 %v1173
        %v1361 = vunpack.c.h.b16 %v1173
        %v1362 = vunpack.c.l.b16 %v1174
        %v1363 = vunpack.c.h.b16 %v1174
        %v1364 = vunpack.c.l.b16 %v1175
        %v1365 = vunpack.c.h.b16 %v1175
        %v1366 = vunpack.c.l.b16 %v1176
        %v1367 = vunpack.c.h.b16 %v1176
        %v1368 = vunpack.c.l.b16 %v1177
        %v1369 = vunpack.c.h.b16 %v1177
        %v1370 = vunpack.c.l.b16 %v1178
        %v1371 = vunpack.c.h.b16 %v1178
        %v1372 = vunpack.c.l.b16 %v1179
        %v1373 = vunpack.c.h.b16 %v1179
        %v1374 = vunpack.c.l.b16 %v1180
        %v1375 = vunpack.c.h.b16 %v1180
        %v1376 = vunpack.c.l.b16 %v1181
        %v1377 = vunpack.c.h.b16 %v1181
        %v1378 = vunpack.c.l.b16 %v1182
        %v1379 = vunpack.c.h.b16 %v1182
        %v1380 = vunpack.c.l.b16 %v1183
        %v1381 = vunpack.c.h.b16 %v1183
        %v1382 = vunpack.c.l.b16 %v1184
        %v1383 = vunpack.c.h.b16 %v1184
        %v1384 = vunpack.c.l.b16 %v1185
        %v1385 = vunpack.c.h.b16 %v1185
        %v1386 = vunpack.c.l.b16 %v1186
        %v1387 = vunpack.c.h.b16 %v1186
        %v1388 = vunpack.c.l.b16 %v1187
        %v1389 = vunpack.c.h.b16 %v1187
        %v1390 = vunpack.c.l.b16 %v1188
        %v1391 = vunpack.c.h.b16 %v1188
        %v1392 = vunpack.c.l.b16 %v1189
        %v1393 = vunpack.c.h.b16 %v1189
        %v1394 = vunpack.c.l.b16 %v1190
        %v1395 = vunpack.c.h.b16 %v1190
        %v1396 = vunpack.c.l.b16 %v1191
        %v1397 = vunpack.c.h.b16 %v1191
        %v1398 = vunpack.c.l.b16 %v1192
        %v1399 = vunpack.c.h.b16 %v1192
        %v1400 = vunpack.c.l.b16 %v1193
        %v1401 = vunpack.c.h.b16 %v1193
        %v1402 = vunpack.c.l.b16 %v1194
        %v1403 = vunpack.c.h.b16 %v1194
        %v1404 = vunpack.c.l.b16 %v1195
        %v1405 = vunpack.c.h.b16 %v1195
        %v1406 = vunpack.c.l.b16 %v1196
        %v1407 = vunpack.c.h.b16 %v1196
        %v1408 = vunpack.c.l.b16 %v1197
        %v1409 = vunpack.c.h.b16 %v1197
        %v1410 = vunpack.c.l.b16 %v1198
        %v1411 = vunpack.c.h.b16 %v1198
        %v1412 = vunpack.c.l.b16 %v1199
        %v1413 = vunpack.c.h.b16 %v1199
        %v1414 = vunpack.c.l.b16 %v1200
        %v1415 = vunpack.c.h.b16 %v1200
        %v1416 = vunpack.c.l.b16 %v1201
        %v1417 = vunpack.c.h.b16 %v1201
        %v1418 = vunpack.c.l.b16 %v1202
        %v1419 = vunpack.c.h.b16 %v1202
        %v1420 = vunpack.c.l.b16 %v1203
        %v1421 = vunpack.c.h.b16 %v1203
        %v1422 = vunpack.c.l.b16 %v1204
        %v1423 = vunpack.c.h.b16 %v1204
        %v1424 = vunpack.c.l.b16 %v1205
        %v1425 = vunpack.c.h.b16 %v1205
        %v1426 = vunpack.c.l.b16 %v1206
        %v1427 = vunpack.c.h.b16 %v1206
        %v1428 = vunpack.c.l.b16 %v1207
        %v1429 = vunpack.c.h.b16 %v1207
        %v1430 = vunpack.c.l.b16 %v1208
        %v1431 = vunpack.c.h.b16 %v1208
        %v1432 = vunpack.c.l.b16 %v1209
        %v1433 = vunpack.c.h.b16 %v1209
        %v1434 = vunpack.c.l.b16 %v1210
        %v1435 = vunpack.c.h.b16 %v1210
        %v1436 = vunpack.c.l.b16 %v1211
        %v1437 = vunpack.c.h.b16 %v1211
        %v1438 = vunpack.c.l.b16 %v1212
        %v1439 = vunpack.c.h.b16 %v1212
        %v1440 = vunpack.c.l.b16 %v1213
        %v1441 = vunpack.c.h.b16 %v1213
        %v1442 = vunpack.c.l.b16 %v1214
        %v1443 = vunpack.c.h.b16 %v1214
        %v1444 = vunpack.c.l.b16 %v1215
        %v1445 = vunpack.c.h.b16 %v1215
        %v1446 = vunpack.c.l.b16 %v1216
        %v1447 = vunpack.c.h.b16 %v1216
        %v1448 = vunpack.c.l.b16 %v1217
        %v1449 = vunpack.c.h.b16 %v1217
        %v1450 = vunpack.c.l.b16 %v1218
        %v1451 = vunpack.c.h.b16 %v1218
        %v1452 = vunpack.c.l.b16 %v1219
        %v1453 = vunpack.c.h.b16 %v1219
        %v1454 = vunpack.c.l.b16 %v1220
        %v1455 = vunpack.c.h.b16 %v1220
        %v1456 = vunpack.c.l.b16 %v1221
        %v1457 = vunpack.c.h.b16 %v1221
        %v1458 = vunpack.c.l.b16 %v1222
        %v1459 = vunpack.c.h.b16 %v1222
        %v1460 = vpack.c.b16 %v1334, %v1332
        %v1461 = vpack.c.b16 %v1335, %v1333
        %v1462 = vpack.c.b16 %v1338, %v1336
        %v1463 = vpack.c.b16 %v1339, %v1337
        %v1464 = vpack.c.b16 %v1342, %v1340
        %v1465 = vpack.c.b16 %v1343, %v1341
        %v1466 = vpack.c.b16 %v1346, %v1344
        %v1467 = vpack.c.b16 %v1347, %v1345
        %v1468 = vpack.c.b16 %v1350, %v1348
        %v1469 = vpack.c.b16 %v1351, %v1349
        %v1470 = vpack.c.b16 %v1354, %v1352
        %v1471 = vpack.c.b16 %v1355, %v1353
        %v1472 = vpack.c.b16 %v1358, %v1356
        %v1473 = vpack.c.b16 %v1359, %v1357
        %v1474 = vpack.c.b16 %v1362, %v1360
        %v1475 = vpack.c.b16 %v1363, %v1361
        %v1476 = vpack.c.b16 %v1366, %v1364
        %v1477 = vpack.c.b16 %v1367, %v1365
        %v1478 = vpack.c.b16 %v1370, %v1368
        %v1479 = vpack.c.b16 %v1371, %v1369
        %v1480 = vpack.c.b16 %v1374, %v1372
        %v1481 = vpack.c.b16 %v1375, %v1373
        %v1482 = vpack.c.b16 %v1378, %v1376
        %v1483 = vpack.c.b16 %v1379, %v1377
        %v1484 = vpack.c.b16 %v1382, %v1380
        %v1485 = vpack.c.b16 %v1383, %v1381
        %v1486 = vpack.c.b16 %v1386, %v1384
        %v1487 = vpack.c.b16 %v1387, %v1385
        %v1488 = vpack.c.b16 %v1390, %v1388
        %v1489 = vpack.c.b16 %v1391, %v1389
        %v1490 = vpack.c.b16 %v1394, %v1392
        %v1491 = vpack.c.b16 %v1395, %v1393
        %v1492 = vpack.c.b16 %v1398, %v1396
        %v1493 = vpack.c.b16 %v1399, %v1397
        %v1494 = vpack.c.b16 %v1402, %v1400
        %v1495 = vpack.c.b16 %v1403, %v1401
        %v1496 = vpack.c.b16 %v1406, %v1404
        %v1497 = vpack.c.b16 %v1407, %v1405
        %v1498 = vpack.c.b16 %v1410, %v1408
        %v1499 = vpack.c.b16 %v1411, %v1409
        %v1500 = vpack.c.b16 %v1414, %v1412
        %v1501 = vpack.c.b16 %v1415, %v1413
        %v1502 = vpack.c.b16 %v1418, %v1416
        %v1503 = vpack.c.b16 %v1419, %v1417
        %v1504 = vpack.c.b16 %v1422, %v1420
        %v1505 = vpack.c.b16 %v1423, %v1421
        %v1506 = vpack.c.b16 %v1426, %v1424
        %v1507 = vpack.c.b16 %v1427, %v1425
        %v1508 = vpack.c.b16 %v1430, %v1428
        %v1509 = vpack.c.b16 %v1431, %v1429
        %v1510 = vpack.c.b16 %v1434, %v1432
        %v1511 = vpack.c.b16 %v1435, %v1433
        %v1512 = vpack.c.b16 %v1438, %v1436
        %v1513 = vpack.c.b16 %v1439, %v1437
        %v1514 = vpack.c.b16 %v1442, %v1440
        %v1515 = vpack.c.b16 %v1443, %v1441
        %v1516 = vpack.c.b16 %v1446, %v1444
        %v1517 = vpack.c.b16 %v1447, %v1445
        %v1518 = vpack.c.b16 %v1450, %v1448
        %v1519 = vpack.c.b16 %v1451, %v1449
        %v1520 = vpack.c.b16 %v1454, %v1452
        %v1521 = vpack.c.b16 %v1455, %v1453
        %v1522 = vpack.c.b16 %v1458, %v1456
        %v1523 = vpack.c.b16 %v1459, %v1457
        %1588 = vmatprep.subr.bf16.mxu0 %v1461
        %1589 = vmatpush1.bf16.msra.mxu0 %v1460
        %1590 = vmatprep.subr.bf16.mxu0 %v1463
        %1591 = vmatpush1.bf16.msra.mxu0 %v1462
        %1592 = vmatprep.subr.bf16.mxu0 %v1465
        %1593 = vmatpush1.bf16.msra.mxu0 %v1464
        %1594 = vmatprep.subr.bf16.mxu0 %v1467
        %1595 = vmatpush1.bf16.msra.mxu0 %v1466
        %1596 = vmatprep.subr.bf16.mxu0 %v1469
        %1597 = vmatpush1.bf16.msra.mxu0 %v1468
        %1598 = vmatprep.subr.bf16.mxu0 %v1471
        %1599 = vmatpush1.bf16.msra.mxu0 %v1470
        %1600 = vmatprep.subr.bf16.mxu0 %v1473
        %1601 = vmatpush1.bf16.msra.mxu0 %v1472
        %1602 = vmatprep.subr.bf16.mxu0 %v1475
        %1603 = vmatpush1.bf16.msra.mxu0 %v1474
        %1604 = vmatprep.subr.bf16.mxu0 %v1477
        %1605 = vmatpush1.bf16.msra.mxu0 %v1476
        %1606 = vmatprep.subr.bf16.mxu0 %v1479
        %1607 = vmatpush1.bf16.msra.mxu0 %v1478
        %1608 = vmatprep.subr.bf16.mxu0 %v1481
        %1609 = vmatpush1.bf16.msra.mxu0 %v1480
        %1610 = vmatprep.subr.bf16.mxu0 %v1483
        %1611 = vmatpush1.bf16.msra.mxu0 %v1482
        %1612 = vmatprep.subr.bf16.mxu0 %v1485
        %1613 = vmatpush1.bf16.msra.mxu0 %v1484
        %1614 = vmatprep.subr.bf16.mxu0 %v1487
        %1615 = vmatpush1.bf16.msra.mxu0 %v1486
        %1616 = vmatprep.subr.bf16.mxu0 %v1489
        %1617 = vmatpush1.bf16.msra.mxu0 %v1488
        %1618 = vmatprep.subr.bf16.mxu0 %v1491
        %1619 = vmatpush1.bf16.msra.mxu0 %v1490
        %1620 = vmatprep.mubr.bf16.mxu0 %v1226
        %1621 = vmatmul.mubr.bf16.gmra.mrb[0].mxu0 %v1225
        %v1622 = vpop.f32.mrb[0].mxu0
        %v1623 = vadd.f32 %v1261, %v1622
        %v1624 = vpop.f32.mrb[0].mxu0
        %v1625 = vadd.f32 %v1265, %v1624
        %v1626 = vpop.f32.mrb[0].mxu0
        %v1627 = vadd.f32 %v1261, %v1626
        %v1628 = vpop.f32.mrb[0].mxu0
        %v1629 = vadd.f32 %v1265, %v1628
        %1630 = vmatprep.mubr.bf16.mxu0 %v1230
        %1631 = vmatmul.mubr.bf16.gmra.mrb[0].mxu0 %v1229
        %v1632 = vpop.f32.mrb[0].mxu0
        %v1633 = vadd.f32 %v1261, %v1632
        %v1634 = vpop.f32.mrb[0].mxu0
        %v1635 = vadd.f32 %v1265, %v1634
        %v1636 = vpop.f32.mrb[0].mxu0
        %v1637 = vadd.f32 %v1261, %v1636
        %v1638 = vpop.f32.mrb[0].mxu0
        %v1639 = vadd.f32 %v1265, %v1638
        %1640 = vmatprep.mubr.bf16.mxu0 %v1234
        %1641 = vmatmul.mubr.bf16.gmra.mrb[0].mxu0 %v1233
        %v1642 = vpop.f32.mrb[0].mxu0
        %v1643 = vadd.f32 %v1261, %v1642
        %v1644 = vpop.f32.mrb[0].mxu0
        %v1645 = vadd.f32 %v1265, %v1644
        %v1646 = vpop.f32.mrb[0].mxu0
        %v1647 = vadd.f32 %v1261, %v1646
        %v1648 = vpop.f32.mrb[0].mxu0
        %v1649 = vadd.f32 %v1265, %v1648
        %1650 = vmatprep.mubr.bf16.mxu0 %v1238
        %1651 = vmatmul.mubr.bf16.gmra.mrb[0].mxu0 %v1237
        %v1652 = vpop.f32.mrb[0].mxu0
        %v1653 = vadd.f32 %v1261, %v1652
        %v1654 = vpop.f32.mrb[0].mxu0
        %v1655 = vadd.f32 %v1265, %v1654
        %v1656 = vpop.f32.mrb[0].mxu0
        %v1657 = vadd.f32 %v1261, %v1656
        %v1658 = vpop.f32.mrb[0].mxu0
        %v1659 = vadd.f32 %v1265, %v1658
        %1660 = vmatprep.mubr.bf16.mxu0 %v1242
        %1661 = vmatmul.mubr.bf16.gmra.mrb[0].mxu0 %v1241
        %v1662 = vpop.f32.mrb[0].mxu0
        %v1663 = vadd.f32 %v1261, %v1662
        %v1664 = vpop.f32.mrb[0].mxu0
        %v1665 = vadd.f32 %v1265, %v1664
        %v1666 = vpop.f32.mrb[0].mxu0
        %v1667 = vadd.f32 %v1261, %v1666
        %v1668 = vpop.f32.mrb[0].mxu0
        %v1669 = vadd.f32 %v1265, %v1668
        %1670 = vmatprep.mubr.bf16.mxu0 %v1246
        %1671 = vmatmul.mubr.bf16.gmra.mrb[0].mxu0 %v1245
        %v1672 = vpop.f32.mrb[0].mxu0
        %v1673 = vadd.f32 %v1261, %v1672
        %v1674 = vpop.f32.mrb[0].mxu0
        %v1675 = vadd.f32 %v1265, %v1674
        %v1676 = vpop.f32.mrb[0].mxu0
        %v1677 = vadd.f32 %v1261, %v1676
        %v1678 = vpop.f32.mrb[0].mxu0
        %v1679 = vadd.f32 %v1265, %v1678
        %1680 = vmatprep.mubr.bf16.mxu0 %v1250
        %1681 = vmatmul.mubr.bf16.gmra.mrb[0].mxu0 %v1249
        %v1682 = vpop.f32.mrb[0].mxu0
        %v1683 = vadd.f32 %v1261, %v1682
        %v1684 = vpop.f32.mrb[0].mxu0
        %v1685 = vadd.f32 %v1265, %v1684
        %v1686 = vpop.f32.mrb[0].mxu0
        %v1687 = vadd.f32 %v1261, %v1686
        %v1688 = vpop.f32.mrb[0].mxu0
        %v1689 = vadd.f32 %v1265, %v1688
        %1690 = vmatprep.mubr.bf16.mxu0 %v1254
        %1691 = vmatmul.mubr.bf16.gmra.mrb[0].mxu0 %v1253
        %v1692 = vpop.f32.mrb[0].mxu0
        %v1693 = vadd.f32 %v1261, %v1692
        %v1694 = vpop.f32.mrb[0].mxu0
        %v1695 = vadd.f32 %v1265, %v1694
        %v1696 = vpop.f32.mrb[0].mxu0
        %v1697 = vadd.f32 %v1261, %v1696
        %v1698 = vpop.f32.mrb[0].mxu0
        %v1699 = vadd.f32 %v1265, %v1698
        %1700 = vdwg.mxu0
        %1701 = vmatprep.subr.bf16.mxu0 %v1493
        %1702 = vmatpush1.bf16.msra.mxu0 %v1492
        %1703 = vmatprep.subr.bf16.mxu0 %v1495
        %1704 = vmatpush1.bf16.msra.mxu0 %v1494
        %1705 = vmatprep.subr.bf16.mxu0 %v1497
        %1706 = vmatpush1.bf16.msra.mxu0 %v1496
        %1707 = vmatprep.subr.bf16.mxu0 %v1499
        %1708 = vmatpush1.bf16.msra.mxu0 %v1498
        %1709 = vmatprep.subr.bf16.mxu0 %v1501
        %1710 = vmatpush1.bf16.msra.mxu0 %v1500
        %1711 = vmatprep.subr.bf16.mxu0 %v1503
        %1712 = vmatpush1.bf16.msra.mxu0 %v1502
        %1713 = vmatprep.subr.bf16.mxu0 %v1505
        %1714 = vmatpush1.bf16.msra.mxu0 %v1504
        %1715 = vmatprep.subr.bf16.mxu0 %v1507
        %1716 = vmatpush1.bf16.msra.mxu0 %v1506
        %1717 = vmatprep.subr.bf16.mxu0 %v1509
        %1718 = vmatpush1.bf16.msra.mxu0 %v1508
        %1719 = vmatprep.subr.bf16.mxu0 %v1511
        %1720 = vmatpush1.bf16.msra.mxu0 %v1510
        %1721 = vmatprep.subr.bf16.mxu0 %v1513
        %1722 = vmatpush1.bf16.msra.mxu0 %v1512
        %1723 = vmatprep.subr.bf16.mxu0 %v1515
        %1724 = vmatpush1.bf16.msra.mxu0 %v1514
        %1725 = vmatprep.subr.bf16.mxu0 %v1517
        %1726 = vmatpush1.bf16.msra.mxu0 %v1516
        %1727 = vmatprep.subr.bf16.mxu0 %v1519
        %1728 = vmatpush1.bf16.msra.mxu0 %v1518
        %1729 = vmatprep.subr.bf16.mxu0 %v1521
        %1730 = vmatpush1.bf16.msra.mxu0 %v1520
        %1731 = vmatprep.subr.bf16.mxu0 %v1523
        %1732 = vmatpush1.bf16.msra.mxu0 %v1522
        %1733 = vmatprep.mubr.bf16.mxu0 %v1228
        %1734 = vmatmul.mubr.bf16.gmra.mrb[0].mxu0 %v1227
        %v1735 = vpop.f32.mrb[0].mxu0
        %v1736 = vadd.f32 %v1623, %v1735
        %v1737 = vpop.f32.mrb[0].mxu0
        %v1738 = vadd.f32 %v1625, %v1737
        %v1739 = vpop.f32.mrb[0].mxu0
        %v1740 = vadd.f32 %v1627, %v1739
        %v1741 = vpop.f32.mrb[0].mxu0
        %v1742 = vadd.f32 %v1629, %v1741
        %1743 = vmatprep.mubr.bf16.mxu0 %v1232
        %1744 = vmatmul.mubr.bf16.gmra.mrb[0].mxu0 %v1231
        %v1745 = vpop.f32.mrb[0].mxu0
        %v1746 = vadd.f32 %v1633, %v1745
        %v1747 = vpop.f32.mrb[0].mxu0
        %v1748 = vadd.f32 %v1635, %v1747
        %v1749 = vpop.f32.mrb[0].mxu0
        %v1750 = vadd.f32 %v1637, %v1749
        %v1751 = vpop.f32.mrb[0].mxu0
        %v1752 = vadd.f32 %v1639, %v1751
        %1753 = vmatprep.mubr.bf16.mxu0 %v1236
        %1754 = vmatmul.mubr.bf16.gmra.mrb[0].mxu0 %v1235
        %v1755 = vpop.f32.mrb[0].mxu0
        %v1756 = vadd.f32 %v1643, %v1755
        %v1757 = vpop.f32.mrb[0].mxu0
        %v1758 = vadd.f32 %v1645, %v1757
        %v1759 = vpop.f32.mrb[0].mxu0
        %v1760 = vadd.f32 %v1647, %v1759
        %v1761 = vpop.f32.mrb[0].mxu0
        %v1762 = vadd.f32 %v1649, %v1761
        %1763 = vmatprep.mubr.bf16.mxu0 %v1240
        %1764 = vmatmul.mubr.bf16.gmra.mrb[0].mxu0 %v1239
        %v1765 = vpop.f32.mrb[0].mxu0
        %v1766 = vadd.f32 %v1653, %v1765
        %v1767 = vpop.f32.mrb[0].mxu0
        %v1768 = vadd.f32 %v1655, %v1767
        %v1769 = vpop.f32.mrb[0].mxu0
        %v1770 = vadd.f32 %v1657, %v1769
        %v1771 = vpop.f32.mrb[0].mxu0
        %v1772 = vadd.f32 %v1659, %v1771
        %1773 = vmatprep.mubr.bf16.mxu0 %v1244
        %1774 = vmatmul.mubr.bf16.gmra.mrb[0].mxu0 %v1243
        %v1775 = vpop.f32.mrb[0].mxu0
        %v1776 = vadd.f32 %v1663, %v1775
        %v1777 = vpop.f32.mrb[0].mxu0
        %v1778 = vadd.f32 %v1665, %v1777
        %v1779 = vpop.f32.mrb[0].mxu0
        %v1780 = vadd.f32 %v1667, %v1779
        %v1781 = vpop.f32.mrb[0].mxu0
        %v1782 = vadd.f32 %v1669, %v1781
        %1783 = vmatprep.mubr.bf16.mxu0 %v1248
        %1784 = vmatmul.mubr.bf16.gmra.mrb[0].mxu0 %v1247
        %v1785 = vpop.f32.mrb[0].mxu0
        %v1786 = vadd.f32 %v1673, %v1785
        %v1787 = vpop.f32.mrb[0].mxu0
        %v1788 = vadd.f32 %v1675, %v1787
        %v1789 = vpop.f32.mrb[0].mxu0
        %v1790 = vadd.f32 %v1677, %v1789
        %v1791 = vpop.f32.mrb[0].mxu0
        %v1792 = vadd.f32 %v1679, %v1791
        %1793 = vmatprep.mubr.bf16.mxu0 %v1252
        %1794 = vmatmul.mubr.bf16.gmra.mrb[0].mxu0 %v1251
        %v1795 = vpop.f32.mrb[0].mxu0
        %v1796 = vadd.f32 %v1683, %v1795
        %v1797 = vpop.f32.mrb[0].mxu0
        %v1798 = vadd.f32 %v1685, %v1797
        %v1799 = vpop.f32.mrb[0].mxu0
        %v1800 = vadd.f32 %v1687, %v1799
        %v1801 = vpop.f32.mrb[0].mxu0
        %v1802 = vadd.f32 %v1689, %v1801
        %1803 = vmatprep.mubr.bf16.mxu0 %v1256
        %1804 = vmatmul.mubr.bf16.gmra.mrb[0].mxu0 %v1255
        %v1805 = vpop.f32.mrb[0].mxu0
        %v1806 = vadd.f32 %v1693, %v1805
        %v1807 = vpop.f32.mrb[0].mxu0
        %v1808 = vadd.f32 %v1695, %v1807
        %v1809 = vpop.f32.mrb[0].mxu0
        %v1810 = vadd.f32 %v1697, %v1809
        %v1811 = vpop.f32.mrb[0].mxu0
        %v1812 = vadd.f32 %v1699, %v1811
        %1813 = vdwg.mxu0
        %v1814 = vmul.f32 %v1736, 0.01
        %v1815 = vmul.f32 %v1738, 0.01
        %v1816 = vmul.f32 %v1740, 0.01
        %v1817 = vmul.f32 %v1742, 0.01
        %v1818 = vmul.f32 %v1746, 0.01
        %v1819 = vmul.f32 %v1748, 0.01
        %v1820 = vmul.f32 %v1750, 0.01
        %v1821 = vmul.f32 %v1752, 0.01
        %v1822 = vmul.f32 %v1756, 0.01
        %v1823 = vmul.f32 %v1758, 0.01
        %v1824 = vmul.f32 %v1760, 0.01
        %v1825 = vmul.f32 %v1762, 0.01
        %v1826 = vmul.f32 %v1766, 0.01
        %v1827 = vmul.f32 %v1768, 0.01
        %v1828 = vmul.f32 %v1770, 0.01
        %v1829 = vmul.f32 %v1772, 0.01
        %v1830 = vmul.f32 %v1776, 0.01
        %v1831 = vmul.f32 %v1778, 0.01
        %v1832 = vmul.f32 %v1780, 0.01
        %v1833 = vmul.f32 %v1782, 0.01
        %v1834 = vmul.f32 %v1786, 0.01
        %v1835 = vmul.f32 %v1788, 0.01
        %v1836 = vmul.f32 %v1790, 0.01
        %v1837 = vmul.f32 %v1792, 0.01
        %v1838 = vmul.f32 %v1796, 0.01
        %v1839 = vmul.f32 %v1798, 0.01
        %v1840 = vmul.f32 %v1800, 0.01
        %v1841 = vmul.f32 %v1802, 0.01
        %v1842 = vmul.f32 %v1806, 0.01
        %v1843 = vmul.f32 %v1808, 0.01
        %v1844 = vmul.f32 %v1810, 0.01
        %v1845 = vmul.f32 %v1812, 0.01
        %v1846 = vmax.f32 %v1736, %v1814
        %v1847 = vmax.f32 %v1738, %v1815
        %v1848 = vmax.f32 %v1740, %v1816
        %v1849 = vmax.f32 %v1742, %v1817
        %v1850 = vmax.f32 %v1746, %v1818
        %v1851 = vmax.f32 %v1748, %v1819
        %v1852 = vmax.f32 %v1750, %v1820
        %v1853 = vmax.f32 %v1752, %v1821
        %v1854 = vmax.f32 %v1756, %v1822
        %v1855 = vmax.f32 %v1758, %v1823
        %v1856 = vmax.f32 %v1760, %v1824
        %v1857 = vmax.f32 %v1762, %v1825
        %v1858 = vmax.f32 %v1766, %v1826
        %v1859 = vmax.f32 %v1768, %v1827
        %v1860 = vmax.f32 %v1770, %v1828
        %v1861 = vmax.f32 %v1772, %v1829
        %v1862 = vmax.f32 %v1776, %v1830
        %v1863 = vmax.f32 %v1778, %v1831
        %v1864 = vmax.f32 %v1780, %v1832
        %v1865 = vmax.f32 %v1782, %v1833
        %v1866 = vmax.f32 %v1786, %v1834
        %v1867 = vmax.f32 %v1788, %v1835
        %v1868 = vmax.f32 %v1790, %v1836
        %v1869 = vmax.f32 %v1792, %v1837
        %v1870 = vmax.f32 %v1796, %v1838
        %v1871 = vmax.f32 %v1798, %v1839
        %v1872 = vmax.f32 %v1800, %v1840
        %v1873 = vmax.f32 %v1802, %v1841
        %v1874 = vmax.f32 %v1806, %v1842
        %v1875 = vmax.f32 %v1808, %v1843
        %v1876 = vmax.f32 %v1810, %v1844
        %v1877 = vmax.f32 %v1812, %v1845
        %v1878 = vld [vmem:[#allocation8] sm:$0xf]
        %v1879 = vld [vmem:[#allocation8 + $0x4] sm:$0xf]
        %v1880 = vld [vmem:[#allocation8 + $0x8] sm:$0xf]
        %v1881 = vld [vmem:[#allocation8 + $0xc] sm:$0xf]
        %v1882 = vld [vmem:[#allocation8 + $0x10] sm:$0xf]
        %v1883 = vld [vmem:[#allocation8 + $0x14] sm:$0xf]
        %v1884 = vld [vmem:[#allocation8 + $0x18] sm:$0xf]
        %v1885 = vld [vmem:[#allocation8 + $0x1c] sm:$0xf]
        %v1886 = vld [vmem:[#allocation8 + $0x20] sm:$0xf]
        %v1887 = vld [vmem:[#allocation8 + $0x24] sm:$0xf]
        %v1888 = vld [vmem:[#allocation8 + $0x28] sm:$0xf]
        %v1889 = vld [vmem:[#allocation8 + $0x2c] sm:$0xf]
        %v1890 = vld [vmem:[#allocation8 + $0x30] sm:$0xf]
        %v1891 = vld [vmem:[#allocation8 + $0x34] sm:$0xf]
        %v1892 = vld [vmem:[#allocation8 + $0x38] sm:$0xf]
        %v1893 = vld [vmem:[#allocation8 + $0x3c] sm:$0xf]
        %v1894 = vld [vmem:[#allocation8 + $0x40] sm:$0xf]
        %v1895 = vld [vmem:[#allocation8 + $0x44] sm:$0xf]
        %v1896 = vld [vmem:[#allocation8 + $0x48] sm:$0xf]
        %v1897 = vld [vmem:[#allocation8 + $0x4c] sm:$0xf]
        %v1898 = vld [vmem:[#allocation8 + $0x50] sm:$0xf]
        %v1899 = vld [vmem:[#allocation8 + $0x54] sm:$0xf]
        %v1900 = vld [vmem:[#allocation8 + $0x58] sm:$0xf]
        %v1901 = vld [vmem:[#allocation8 + $0x5c] sm:$0xf]
        %v1902 = vld [vmem:[#allocation8 + $0x60] sm:$0xf]
        %v1903 = vld [vmem:[#allocation8 + $0x64] sm:$0xf]
        %v1904 = vld [vmem:[#allocation8 + $0x68] sm:$0xf]
        %v1905 = vld [vmem:[#allocation8 + $0x6c] sm:$0xf]
        %v1906 = vld [vmem:[#allocation8 + $0x70] sm:$0xf]
        %v1907 = vld [vmem:[#allocation8 + $0x74] sm:$0xf]
        %v1908 = vld [vmem:[#allocation8 + $0x78] sm:$0xf]
        %v1909 = vld [vmem:[#allocation8 + $0x7c] sm:$0xf]
        %v1910 = vld [vmem:[#allocation10 + $0x2] ss:$0 sm:$0xff]
        %v1911 = vpack.c.bf16 %v1848, %v1846
        %v1912 = vpack.c.bf16 %v1849, %v1847
        %v1913 = vpack.c.bf16 %v1852, %v1850
        %v1914 = vpack.c.bf16 %v1853, %v1851
        %v1915 = vpack.c.bf16 %v1856, %v1854
        %v1916 = vpack.c.bf16 %v1857, %v1855
        %v1917 = vpack.c.bf16 %v1860, %v1858
        %v1918 = vpack.c.bf16 %v1861, %v1859
        %v1919 = vpack.c.bf16 %v1864, %v1862
        %v1920 = vpack.c.bf16 %v1865, %v1863
        %v1921 = vpack.c.bf16 %v1868, %v1866
        %v1922 = vpack.c.bf16 %v1869, %v1867
        %v1923 = vpack.c.bf16 %v1872, %v1870
        %v1924 = vpack.c.bf16 %v1873, %v1871
        %v1925 = vpack.c.bf16 %v1876, %v1874
        %v1926 = vpack.c.bf16 %v1877, %v1875
        %v1959 = vunpack.c.l.b16 %v1878
        %v1960 = vunpack.c.l.b16 %v1879
        %v1961 = vunpack.c.l.b16 %v1880
        %v1962 = vunpack.c.l.b16 %v1881
        %v1963 = vunpack.c.l.b16 %v1882
        %v1964 = vunpack.c.l.b16 %v1883
        %v1965 = vunpack.c.l.b16 %v1884
        %v1966 = vunpack.c.l.b16 %v1885
        %v1967 = vunpack.c.l.b16 %v1886
        %v1968 = vunpack.c.l.b16 %v1887
        %v1969 = vunpack.c.l.b16 %v1888
        %v1970 = vunpack.c.l.b16 %v1889
        %v1971 = vunpack.c.l.b16 %v1890
        %v1972 = vunpack.c.l.b16 %v1891
        %v1973 = vunpack.c.l.b16 %v1892
        %v1974 = vunpack.c.l.b16 %v1893
        %v1975 = vunpack.c.l.b16 %v1894
        %v1976 = vunpack.c.l.b16 %v1895
        %v1977 = vunpack.c.l.b16 %v1896
        %v1978 = vunpack.c.l.b16 %v1897
        %v1979 = vunpack.c.l.b16 %v1898
        %v1980 = vunpack.c.l.b16 %v1899
        %v1981 = vunpack.c.l.b16 %v1900
        %v1982 = vunpack.c.l.b16 %v1901
        %v1983 = vunpack.c.l.b16 %v1902
        %v1984 = vunpack.c.l.b16 %v1903
        %v1985 = vunpack.c.l.b16 %v1904
        %v1986 = vunpack.c.l.b16 %v1905
        %v1987 = vunpack.c.l.b16 %v1906
        %v1988 = vunpack.c.l.b16 %v1907
        %v1989 = vunpack.c.l.b16 %v1908
        %v1990 = vunpack.c.l.b16 %v1909
        %v1991 = vpack.c.b16 %v1960, %v1959
        %v1992 = vpack.c.b16 %v1962, %v1961
        %v1993 = vpack.c.b16 %v1964, %v1963
        %v1994 = vpack.c.b16 %v1966, %v1965
        %v1995 = vpack.c.b16 %v1968, %v1967
        %v1996 = vpack.c.b16 %v1970, %v1969
        %v1997 = vpack.c.b16 %v1972, %v1971
        %v1998 = vpack.c.b16 %v1974, %v1973
        %v1999 = vpack.c.b16 %v1976, %v1975
        %v2000 = vpack.c.b16 %v1978, %v1977
        %v2001 = vpack.c.b16 %v1980, %v1979
        %v2002 = vpack.c.b16 %v1982, %v1981
        %v2003 = vpack.c.b16 %v1984, %v1983
        %v2004 = vpack.c.b16 %v1986, %v1985
        %v2005 = vpack.c.b16 %v1988, %v1987
        %v2006 = vpack.c.b16 %v1990, %v1989
        %2023 = vmatprep.subr.bf16.mxu0 0
        %2024 = vmatpush1.bf16.msra.mxu0 %v1991
        %2025 = vmatprep.subr.bf16.mxu0 0
        %2026 = vmatpush1.bf16.msra.mxu0 %v1992
        %2027 = vmatprep.subr.bf16.mxu0 0
        %2028 = vmatpush1.bf16.msra.mxu0 %v1993
        %2029 = vmatprep.subr.bf16.mxu0 0
        %2030 = vmatpush1.bf16.msra.mxu0 %v1994
        %2031 = vmatprep.subr.bf16.mxu0 0
        %2032 = vmatpush1.bf16.msra.mxu0 %v1995
        %2033 = vmatprep.subr.bf16.mxu0 0
        %2034 = vmatpush1.bf16.msra.mxu0 %v1996
        %2035 = vmatprep.subr.bf16.mxu0 0
        %2036 = vmatpush1.bf16.msra.mxu0 %v1997
        %2037 = vmatprep.subr.bf16.mxu0 0
        %2038 = vmatpush1.bf16.msra.mxu0 %v1998
        %2039 = vmatprep.subr.bf16.mxu0 0
        %2040 = vmatpush1.bf16.msra.mxu0 %v1999
        %2041 = vmatprep.subr.bf16.mxu0 0
        %2042 = vmatpush1.bf16.msra.mxu0 %v2000
        %2043 = vmatprep.subr.bf16.mxu0 0
        %2044 = vmatpush1.bf16.msra.mxu0 %v2001
        %2045 = vmatprep.subr.bf16.mxu0 0
        %2046 = vmatpush1.bf16.msra.mxu0 %v2002
        %2047 = vmatprep.subr.bf16.mxu0 0
        %2048 = vmatpush1.bf16.msra.mxu0 %v2003
        %2049 = vmatprep.subr.bf16.mxu0 0
        %2050 = vmatpush1.bf16.msra.mxu0 %v2004
        %2051 = vmatprep.subr.bf16.mxu0 0
        %2052 = vmatpush1.bf16.msra.mxu0 %v2005
        %2053 = vmatprep.subr.bf16.mxu0 0
        %2054 = vmatpush1.bf16.msra.mxu0 %v2006
        %2055 = vmatprep.mubr.bf16.mxu0 %v1912
        %2056 = vmatmul.mubr.bf16.gmra.mrb[0].mxu0 %v1911
        %v2057 = vpop.f32.mrb[0].mxu0
        %v2058 = vadd.f32 %v1910, %v2057
        %v2059 = vpop.f32.mrb[0].mxu0
        %v2060 = vpop.f32.mrb[0].mxu0
        %v2061 = vadd.f32 %v1910, %v2060
        %v2062 = vpop.f32.mrb[0].mxu0
        %2063 = vmatprep.mubr.bf16.mxu0 %v1914
        %2064 = vmatmul.mubr.bf16.gmra.mrb[0].mxu0 %v1913
        %v2065 = vpop.f32.mrb[0].mxu0
        %v2066 = vadd.f32 %v1910, %v2065
        %v2067 = vpop.f32.mrb[0].mxu0
        %v2068 = vpop.f32.mrb[0].mxu0
        %v2069 = vadd.f32 %v1910, %v2068
        %v2070 = vpop.f32.mrb[0].mxu0
        %2071 = vmatprep.mubr.bf16.mxu0 %v1916
        %2072 = vmatmul.mubr.bf16.gmra.mrb[0].mxu0 %v1915
        %v2073 = vpop.f32.mrb[0].mxu0
        %v2074 = vadd.f32 %v1910, %v2073
        %v2075 = vpop.f32.mrb[0].mxu0
        %v2076 = vpop.f32.mrb[0].mxu0
        %v2077 = vadd.f32 %v1910, %v2076
        %v2078 = vpop.f32.mrb[0].mxu0
        %2079 = vmatprep.mubr.bf16.mxu0 %v1918
        %2080 = vmatmul.mubr.bf16.gmra.mrb[0].mxu0 %v1917
        %v2081 = vpop.f32.mrb[0].mxu0
        %v2082 = vadd.f32 %v1910, %v2081
        %v2083 = vpop.f32.mrb[0].mxu0
        %v2084 = vpop.f32.mrb[0].mxu0
        %v2085 = vadd.f32 %v1910, %v2084
        %v2086 = vpop.f32.mrb[0].mxu0
        %2087 = vmatprep.mubr.bf16.mxu0 %v1920
        %2088 = vmatmul.mubr.bf16.gmra.mrb[0].mxu0 %v1919
        %v2089 = vpop.f32.mrb[0].mxu0
        %v2090 = vadd.f32 %v1910, %v2089
        %v2091 = vpop.f32.mrb[0].mxu0
        %v2092 = vpop.f32.mrb[0].mxu0
        %v2093 = vadd.f32 %v1910, %v2092
        %v2094 = vpop.f32.mrb[0].mxu0
        %2095 = vmatprep.mubr.bf16.mxu0 %v1922
        %2096 = vmatmul.mubr.bf16.gmra.mrb[0].mxu0 %v1921
        %v2097 = vpop.f32.mrb[0].mxu0
        %v2098 = vadd.f32 %v1910, %v2097
        %v2099 = vpop.f32.mrb[0].mxu0
        %v2100 = vpop.f32.mrb[0].mxu0
        %v2101 = vadd.f32 %v1910, %v2100
        %v2102 = vpop.f32.mrb[0].mxu0
        %2103 = vmatprep.mubr.bf16.mxu0 %v1924
        %2104 = vmatmul.mubr.bf16.gmra.mrb[0].mxu0 %v1923
        %v2105 = vpop.f32.mrb[0].mxu0
        %v2106 = vadd.f32 %v1910, %v2105
        %v2107 = vpop.f32.mrb[0].mxu0
        %v2108 = vpop.f32.mrb[0].mxu0
        %v2109 = vadd.f32 %v1910, %v2108
        %v2110 = vpop.f32.mrb[0].mxu0
        %2111 = vmatprep.mubr.bf16.mxu0 %v1926
        %2112 = vmatmul.mubr.bf16.gmra.mrb[0].mxu0 %v1925
        %v2113 = vpop.f32.mrb[0].mxu0
        %v2114 = vadd.f32 %v1910, %v2113
        %v2115 = vpop.f32.mrb[0].mxu0
        %v2116 = vpop.f32.mrb[0].mxu0
        %v2117 = vadd.f32 %v1910, %v2116
        %v2118 = vpop.f32.mrb[0].mxu0
        %2119 = vdwg.mxu0
        %v2120 = vmul.f32 %v2058, 0.01
        %v2121 = vmul.f32 %v2061, 0.01
        %v2122 = vmul.f32 %v2066, 0.01
        %v2123 = vmul.f32 %v2069, 0.01
        %v2124 = vmul.f32 %v2074, 0.01
        %v2125 = vmul.f32 %v2077, 0.01
        %v2126 = vmul.f32 %v2082, 0.01
        %v2127 = vmul.f32 %v2085, 0.01
        %v2128 = vmul.f32 %v2090, 0.01
        %v2129 = vmul.f32 %v2093, 0.01
        %v2130 = vmul.f32 %v2098, 0.01
        %v2131 = vmul.f32 %v2101, 0.01
        %v2132 = vmul.f32 %v2106, 0.01
        %v2133 = vmul.f32 %v2109, 0.01
        %v2134 = vmul.f32 %v2114, 0.01
        %v2135 = vmul.f32 %v2117, 0.01
        %v2136 = vmax.f32 %v2058, %v2120
        %v2137 = vmax.f32 %v2061, %v2121
        %v2138 = vmax.f32 %v2066, %v2122
        %v2139 = vmax.f32 %v2069, %v2123
        %v2140 = vmax.f32 %v2074, %v2124
        %v2141 = vmax.f32 %v2077, %v2125
        %v2142 = vmax.f32 %v2082, %v2126
        %v2143 = vmax.f32 %v2085, %v2127
        %v2144 = vmax.f32 %v2090, %v2128
        %v2145 = vmax.f32 %v2093, %v2129
        %v2146 = vmax.f32 %v2098, %v2130
        %v2147 = vmax.f32 %v2101, %v2131
        %v2148 = vmax.f32 %v2106, %v2132
        %v2149 = vmax.f32 %v2109, %v2133
        %v2150 = vmax.f32 %v2114, %v2134
        %v2151 = vmax.f32 %v2117, %v2135
        %v2152 = vld [vmem:[#allocation8 + $0x80] sm:$0xf]
        %v2153 = vld [vmem:[#allocation8 + $0x84] sm:$0xf]
        %v2154 = vld [vmem:[#allocation8 + $0x88] sm:$0xf]
        %v2155 = vld [vmem:[#allocation8 + $0x8c] sm:$0xf]
        %v2156 = vld [vmem:[#allocation8 + $0x90] sm:$0xf]
        %v2157 = vld [vmem:[#allocation8 + $0x94] sm:$0xf]
        %v2158 = vld [vmem:[#allocation8 + $0x98] sm:$0xf]
        %v2159 = vld [vmem:[#allocation8 + $0x9c] sm:$0xf]
        %v2160 = vld [vmem:[#allocation8 + $0xa0] sm:$0xf]
        %v2161 = vld [vmem:[#allocation8 + $0xa4] sm:$0xf]
        %v2162 = vld [vmem:[#allocation8 + $0xa8] sm:$0xf]
        %v2163 = vld [vmem:[#allocation8 + $0xac] sm:$0xf]
        %v2164 = vld [vmem:[#allocation8 + $0xb0] sm:$0xf]
        %v2165 = vld [vmem:[#allocation8 + $0xb4] sm:$0xf]
        %v2166 = vld [vmem:[#allocation8 + $0xb8] sm:$0xf]
        %v2167 = vld [vmem:[#allocation8 + $0xbc] sm:$0xf]
        %v2168 = vld [vmem:[#allocation10 + $0x3] ss:$0 sm:$0xff]
        %v2169 = vpack.c.bf16 %v2137, %v2136
        %v2170 = vpack.c.bf16 %v2139, %v2138
        %v2171 = vpack.c.bf16 %v2141, %v2140
        %v2172 = vpack.c.bf16 %v2143, %v2142
        %v2173 = vpack.c.bf16 %v2145, %v2144
        %v2174 = vpack.c.bf16 %v2147, %v2146
        %v2175 = vpack.c.bf16 %v2149, %v2148
        %v2176 = vpack.c.bf16 %v2151, %v2150
        %v2193 = vunpack.c.l.b16 %v2152
        %v2194 = vunpack.c.l.b16 %v2153
        %v2195 = vunpack.c.l.b16 %v2154
        %v2196 = vunpack.c.l.b16 %v2155
        %v2197 = vunpack.c.l.b16 %v2156
        %v2198 = vunpack.c.l.b16 %v2157
        %v2199 = vunpack.c.l.b16 %v2158
        %v2200 = vunpack.c.l.b16 %v2159
        %v2201 = vunpack.c.l.b16 %v2160
        %v2202 = vunpack.c.l.b16 %v2161
        %v2203 = vunpack.c.l.b16 %v2162
        %v2204 = vunpack.c.l.b16 %v2163
        %v2205 = vunpack.c.l.b16 %v2164
        %v2206 = vunpack.c.l.b16 %v2165
        %v2207 = vunpack.c.l.b16 %v2166
        %v2208 = vunpack.c.l.b16 %v2167
        %v2209 = vpack.c.b16 %v2194, %v2193
        %v2210 = vpack.c.b16 %v2196, %v2195
        %v2211 = vpack.c.b16 %v2198, %v2197
        %v2212 = vpack.c.b16 %v2200, %v2199
        %v2213 = vpack.c.b16 %v2202, %v2201
        %v2214 = vpack.c.b16 %v2204, %v2203
        %v2215 = vpack.c.b16 %v2206, %v2205
        %v2216 = vpack.c.b16 %v2208, %v2207
        %2225 = vmatprep.subr.bf16.mxu0 0
        %2226 = vmatpush1.bf16.msra.mxu0 %v2209
        %2227 = vmatprep.subr.bf16.mxu0 0
        %2228 = vmatpush1.bf16.msra.mxu0 %v2210
        %2229 = vmatprep.subr.bf16.mxu0 0
        %2230 = vmatpush1.bf16.msra.mxu0 %v2211
        %2231 = vmatprep.subr.bf16.mxu0 0
        %2232 = vmatpush1.bf16.msra.mxu0 %v2212
        %2233 = vmatprep.subr.bf16.mxu0 0
        %2234 = vmatpush1.bf16.msra.mxu0 %v2213
        %2235 = vmatprep.subr.bf16.mxu0 0
        %2236 = vmatpush1.bf16.msra.mxu0 %v2214
        %2237 = vmatprep.subr.bf16.mxu0 0
        %2238 = vmatpush1.bf16.msra.mxu0 %v2215
        %2239 = vmatprep.subr.bf16.mxu0 0
        %2240 = vmatpush1.bf16.msra.mxu0 %v2216
        %2241 = vmatprep.subr.bf16.mxu0 0
        %2242 = vmatpush1.bf16.msra.mxu0 0
        %2243 = vmatprep.subr.bf16.mxu0 0
        %2244 = vmatpush1.bf16.msra.mxu0 0
        %2245 = vmatprep.subr.bf16.mxu0 0
        %2246 = vmatpush1.bf16.msra.mxu0 0
        %2247 = vmatprep.subr.bf16.mxu0 0
        %2248 = vmatpush1.bf16.msra.mxu0 0
        %2249 = vmatprep.subr.bf16.mxu0 0
        %2250 = vmatpush1.bf16.msra.mxu0 0
        %2251 = vmatprep.subr.bf16.mxu0 0
        %2252 = vmatpush1.bf16.msra.mxu0 0
        %2253 = vmatprep.subr.bf16.mxu0 0
        %2254 = vmatpush1.bf16.msra.mxu0 0
        %2255 = vmatprep.subr.bf16.mxu0 0
        %2256 = vmatpush1.bf16.msra.mxu0 0
        %2257 = vmatprep.mubr.bf16.mxu0 0
        %2258 = vmatmul.mubr.bf16.gmra.mrb[0].mxu0 %v2169
        %v2259 = vpop.f32.mrb[0].mxu0
        %v2260 = vadd.f32 %v2168, %v2259
        %v2261 = vpop.f32.mrb[0].mxu0
        %v2262 = vpop.f32.mrb[0].mxu0
        %v2263 = vadd.f32 %v2168, %v2262
        %v2264 = vpop.f32.mrb[0].mxu0
        %2265 = vmatprep.mubr.bf16.mxu0 0
        %2266 = vmatmul.mubr.bf16.gmra.mrb[0].mxu0 %v2170
        %v2267 = vpop.f32.mrb[0].mxu0
        %v2268 = vadd.f32 %v2168, %v2267
        %v2269 = vpop.f32.mrb[0].mxu0
        %v2270 = vpop.f32.mrb[0].mxu0
        %v2271 = vadd.f32 %v2168, %v2270
        %v2272 = vpop.f32.mrb[0].mxu0
        %2273 = vmatprep.mubr.bf16.mxu0 0
        %2274 = vmatmul.mubr.bf16.gmra.mrb[0].mxu0 %v2171
        %v2275 = vpop.f32.mrb[0].mxu0
        %v2276 = vadd.f32 %v2168, %v2275
        %v2277 = vpop.f32.mrb[0].mxu0
        %v2278 = vpop.f32.mrb[0].mxu0
        %v2279 = vadd.f32 %v2168, %v2278
        %v2280 = vpop.f32.mrb[0].mxu0
        %2281 = vmatprep.mubr.bf16.mxu0 0
        %2282 = vmatmul.mubr.bf16.gmra.mrb[0].mxu0 %v2172
        %v2283 = vpop.f32.mrb[0].mxu0
        %v2284 = vadd.f32 %v2168, %v2283
        %v2285 = vpop.f32.mrb[0].mxu0
        %v2286 = vpop.f32.mrb[0].mxu0
        %v2287 = vadd.f32 %v2168, %v2286
        %v2288 = vpop.f32.mrb[0].mxu0
        %2289 = vmatprep.mubr.bf16.mxu0 0
        %2290 = vmatmul.mubr.bf16.gmra.mrb[0].mxu0 %v2173
        %v2291 = vpop.f32.mrb[0].mxu0
        %v2292 = vadd.f32 %v2168, %v2291
        %v2293 = vpop.f32.mrb[0].mxu0
        %v2294 = vpop.f32.mrb[0].mxu0
        %v2295 = vadd.f32 %v2168, %v2294
        %v2296 = vpop.f32.mrb[0].mxu0
        %2297 = vmatprep.mubr.bf16.mxu0 0
        %2298 = vmatmul.mubr.bf16.gmra.mrb[0].mxu0 %v2174
        %v2299 = vpop.f32.mrb[0].mxu0
        %v2300 = vadd.f32 %v2168, %v2299
        %v2301 = vpop.f32.mrb[0].mxu0
        %v2302 = vpop.f32.mrb[0].mxu0
        %v2303 = vadd.f32 %v2168, %v2302
        %v2304 = vpop.f32.mrb[0].mxu0
        %2305 = vmatprep.mubr.bf16.mxu0 0
        %2306 = vmatmul.mubr.bf16.gmra.mrb[0].mxu0 %v2175
        %v2307 = vpop.f32.mrb[0].mxu0
        %v2308 = vadd.f32 %v2168, %v2307
        %v2309 = vpop.f32.mrb[0].mxu0
        %v2310 = vpop.f32.mrb[0].mxu0
        %v2311 = vadd.f32 %v2168, %v2310
        %v2312 = vpop.f32.mrb[0].mxu0
        %2313 = vmatprep.mubr.bf16.mxu0 0
        %2314 = vmatmul.mubr.bf16.gmra.mrb[0].mxu0 %v2176
        %v2315 = vpop.f32.mrb[0].mxu0
        %v2316 = vadd.f32 %v2168, %v2315
        %v2317 = vpop.f32.mrb[0].mxu0
        %v2318 = vpop.f32.mrb[0].mxu0
        %v2319 = vadd.f32 %v2168, %v2318
        %v2320 = vpop.f32.mrb[0].mxu0
        %2321 = vdwg.mxu0
        %v2322 = vmul.f32 %v2260, 0.01
        %v2323 = vmul.f32 %v2263, 0.01
        %v2324 = vmul.f32 %v2268, 0.01
        %v2325 = vmul.f32 %v2271, 0.01
        %v2326 = vmul.f32 %v2276, 0.01
        %v2327 = vmul.f32 %v2279, 0.01
        %v2328 = vmul.f32 %v2284, 0.01
        %v2329 = vmul.f32 %v2287, 0.01
        %v2330 = vmul.f32 %v2292, 0.01
        %v2331 = vmul.f32 %v2295, 0.01
        %v2332 = vmul.f32 %v2300, 0.01
        %v2333 = vmul.f32 %v2303, 0.01
        %v2334 = vmul.f32 %v2308, 0.01
        %v2335 = vmul.f32 %v2311, 0.01
        %v2336 = vmul.f32 %v2316, 0.01
        %v2337 = vmul.f32 %v2319, 0.01
        %v2338 = vmax.f32 %v2260, %v2322
        %v2339 = vmax.f32 %v2263, %v2323
        %v2340 = vmax.f32 %v2268, %v2324
        %v2341 = vmax.f32 %v2271, %v2325
        %v2342 = vmax.f32 %v2276, %v2326
        %v2343 = vmax.f32 %v2279, %v2327
        %v2344 = vmax.f32 %v2284, %v2328
        %v2345 = vmax.f32 %v2287, %v2329
        %v2346 = vmax.f32 %v2292, %v2330
        %v2347 = vmax.f32 %v2295, %v2331
        %v2348 = vmax.f32 %v2300, %v2332
        %v2349 = vmax.f32 %v2303, %v2333
        %v2350 = vmax.f32 %v2308, %v2334
        %v2351 = vmax.f32 %v2311, %v2335
        %v2352 = vmax.f32 %v2316, %v2336
        %v2353 = vmax.f32 %v2319, %v2337
        %v2354 = vld [vmem:[#allocation8 + $0xc0] sm:$0xf]
        %v2355 = vld [vmem:[#allocation8 + $0xc4] sm:$0xf]
        %v2356 = vld [vmem:[#allocation8 + $0xc8] sm:$0xf]
        %v2357 = vld [vmem:[#allocation8 + $0xcc] sm:$0xf]
        %v2358 = vld [vmem:[#allocation8 + $0xd0] sm:$0xf]
        %v2359 = vld [vmem:[#allocation8 + $0xd4] sm:$0xf]
        %v2360 = vld [vmem:[#allocation8 + $0xd8] sm:$0xf]
        %v2361 = vld [vmem:[#allocation8 + $0xdc] sm:$0xf]
        %v2362 = vld [vmem:[#allocation8 + $0xe0] sm:$0xf]
        %v2363 = vld [vmem:[#allocation8 + $0xe4] sm:$0xf]
        %v2364 = vld [vmem:[#allocation8 + $0xe8] sm:$0xf]
        %v2365 = vld [vmem:[#allocation8 + $0xec] sm:$0xf]
        %v2366 = vld [vmem:[#allocation8 + $0xf0] sm:$0xf]
        %v2367 = vld [vmem:[#allocation8 + $0xf4] sm:$0xf]
        %v2368 = vld [vmem:[#allocation8 + $0xf8] sm:$0xf]
        %v2369 = vld [vmem:[#allocation8 + $0xfc] sm:$0xf]
        %v2370 = vld [vmem:[#allocation10 + $0x4] ss:$0 sm:$0xff]
        %v2371 = vpack.c.bf16 %v2339, %v2338
        %v2372 = vpack.c.bf16 %v2341, %v2340
        %v2373 = vpack.c.bf16 %v2343, %v2342
        %v2374 = vpack.c.bf16 %v2345, %v2344
        %v2375 = vpack.c.bf16 %v2347, %v2346
        %v2376 = vpack.c.bf16 %v2349, %v2348
        %v2377 = vpack.c.bf16 %v2351, %v2350
        %v2378 = vpack.c.bf16 %v2353, %v2352
        %v2395 = vunpack.c.l.b16 %v2354
        %v2396 = vunpack.c.l.b16 %v2355
        %v2397 = vunpack.c.l.b16 %v2356
        %v2398 = vunpack.c.l.b16 %v2357
        %v2399 = vunpack.c.l.b16 %v2358
        %v2400 = vunpack.c.l.b16 %v2359
        %v2401 = vunpack.c.l.b16 %v2360
        %v2402 = vunpack.c.l.b16 %v2361
        %v2403 = vunpack.c.l.b16 %v2362
        %v2404 = vunpack.c.l.b16 %v2363
        %v2405 = vunpack.c.l.b16 %v2364
        %v2406 = vunpack.c.l.b16 %v2365
        %v2407 = vunpack.c.l.b16 %v2366
        %v2408 = vunpack.c.l.b16 %v2367
        %v2409 = vunpack.c.l.b16 %v2368
        %v2410 = vunpack.c.l.b16 %v2369
        %v2411 = vpack.c.b16 %v2396, %v2395
        %v2412 = vpack.c.b16 %v2398, %v2397
        %v2413 = vpack.c.b16 %v2400, %v2399
        %v2414 = vpack.c.b16 %v2402, %v2401
        %v2415 = vpack.c.b16 %v2404, %v2403
        %v2416 = vpack.c.b16 %v2406, %v2405
        %v2417 = vpack.c.b16 %v2408, %v2407
        %v2418 = vpack.c.b16 %v2410, %v2409
        %2427 = vmatprep.subr.bf16.mxu0 0
        %2428 = vmatpush1.bf16.msra.mxu0 %v2411
        %2429 = vmatprep.subr.bf16.mxu0 0
        %2430 = vmatpush1.bf16.msra.mxu0 %v2412
        %2431 = vmatprep.subr.bf16.mxu0 0
        %2432 = vmatpush1.bf16.msra.mxu0 %v2413
        %2433 = vmatprep.subr.bf16.mxu0 0
        %2434 = vmatpush1.bf16.msra.mxu0 %v2414
        %2435 = vmatprep.subr.bf16.mxu0 0
        %2436 = vmatpush1.bf16.msra.mxu0 %v2415
        %2437 = vmatprep.subr.bf16.mxu0 0
        %2438 = vmatpush1.bf16.msra.mxu0 %v2416
        %2439 = vmatprep.subr.bf16.mxu0 0
        %2440 = vmatpush1.bf16.msra.mxu0 %v2417
        %2441 = vmatprep.subr.bf16.mxu0 0
        %2442 = vmatpush1.bf16.msra.mxu0 %v2418
        %2443 = vmatprep.subr.bf16.mxu0 0
        %2444 = vmatpush1.bf16.msra.mxu0 0
        %2445 = vmatprep.subr.bf16.mxu0 0
        %2446 = vmatpush1.bf16.msra.mxu0 0
        %2447 = vmatprep.subr.bf16.mxu0 0
        %2448 = vmatpush1.bf16.msra.mxu0 0
        %2449 = vmatprep.subr.bf16.mxu0 0
        %2450 = vmatpush1.bf16.msra.mxu0 0
        %2451 = vmatprep.subr.bf16.mxu0 0
        %2452 = vmatpush1.bf16.msra.mxu0 0
        %2453 = vmatprep.subr.bf16.mxu0 0
        %2454 = vmatpush1.bf16.msra.mxu0 0
        %2455 = vmatprep.subr.bf16.mxu0 0
        %2456 = vmatpush1.bf16.msra.mxu0 0
        %2457 = vmatprep.subr.bf16.mxu0 0
        %2458 = vmatpush1.bf16.msra.mxu0 0
        %2459 = vmatprep.mubr.bf16.mxu0 0
        %2460 = vmatmul.mubr.bf16.gmra.mrb[0].mxu0 %v2371
        %v2461 = vpop.f32.mrb[0].mxu0
        %v2462 = vadd.f32 %v2370, %v2461
        %v2463 = vpop.f32.mrb[0].mxu0
        %v2464 = vpop.f32.mrb[0].mxu0
        %v2465 = vadd.f32 %v2370, %v2464
        %v2466 = vpop.f32.mrb[0].mxu0
        %2467 = vmatprep.mubr.bf16.mxu0 0
        %2468 = vmatmul.mubr.bf16.gmra.mrb[0].mxu0 %v2372
        %v2469 = vpop.f32.mrb[0].mxu0
        %v2470 = vadd.f32 %v2370, %v2469
        %v2471 = vpop.f32.mrb[0].mxu0
        %v2472 = vpop.f32.mrb[0].mxu0
        %v2473 = vadd.f32 %v2370, %v2472
        %v2474 = vpop.f32.mrb[0].mxu0
        %2475 = vmatprep.mubr.bf16.mxu0 0
        %2476 = vmatmul.mubr.bf16.gmra.mrb[0].mxu0 %v2373
        %v2477 = vpop.f32.mrb[0].mxu0
        %v2478 = vadd.f32 %v2370, %v2477
        %v2479 = vpop.f32.mrb[0].mxu0
        %v2480 = vpop.f32.mrb[0].mxu0
        %v2481 = vadd.f32 %v2370, %v2480
        %v2482 = vpop.f32.mrb[0].mxu0
        %2483 = vmatprep.mubr.bf16.mxu0 0
        %2484 = vmatmul.mubr.bf16.gmra.mrb[0].mxu0 %v2374
        %v2485 = vpop.f32.mrb[0].mxu0
        %v2486 = vadd.f32 %v2370, %v2485
        %v2487 = vpop.f32.mrb[0].mxu0
        %v2488 = vpop.f32.mrb[0].mxu0
        %v2489 = vadd.f32 %v2370, %v2488
        %v2490 = vpop.f32.mrb[0].mxu0
        %2491 = vmatprep.mubr.bf16.mxu0 0
        %2492 = vmatmul.mubr.bf16.gmra.mrb[0].mxu0 %v2375
        %v2493 = vpop.f32.mrb[0].mxu0
        %v2494 = vadd.f32 %v2370, %v2493
        %v2495 = vpop.f32.mrb[0].mxu0
        %v2496 = vpop.f32.mrb[0].mxu0
        %v2497 = vadd.f32 %v2370, %v2496
        %v2498 = vpop.f32.mrb[0].mxu0
        %2499 = vmatprep.mubr.bf16.mxu0 0
        %2500 = vmatmul.mubr.bf16.gmra.mrb[0].mxu0 %v2376
        %v2501 = vpop.f32.mrb[0].mxu0
        %v2502 = vadd.f32 %v2370, %v2501
        %v2503 = vpop.f32.mrb[0].mxu0
        %v2504 = vpop.f32.mrb[0].mxu0
        %v2505 = vadd.f32 %v2370, %v2504
        %v2506 = vpop.f32.mrb[0].mxu0
        %2507 = vmatprep.mubr.bf16.mxu0 0
        %2508 = vmatmul.mubr.bf16.gmra.mrb[0].mxu0 %v2377
        %v2509 = vpop.f32.mrb[0].mxu0
        %v2510 = vadd.f32 %v2370, %v2509
        %v2511 = vpop.f32.mrb[0].mxu0
        %v2512 = vpop.f32.mrb[0].mxu0
        %v2513 = vadd.f32 %v2370, %v2512
        %v2514 = vpop.f32.mrb[0].mxu0
        %2515 = vmatprep.mubr.bf16.mxu0 0
        %2516 = vmatmul.mubr.bf16.gmra.mrb[0].mxu0 %v2378
        %v2517 = vpop.f32.mrb[0].mxu0
        %v2518 = vadd.f32 %v2370, %v2517
        %v2519 = vpop.f32.mrb[0].mxu0
        %v2520 = vpop.f32.mrb[0].mxu0
        %v2521 = vadd.f32 %v2370, %v2520
        %v2522 = vpop.f32.mrb[0].mxu0
        %2523 = vdwg.mxu0
        %v2524 = vmul.f32 %v2462, 0.01
        %v2525 = vmul.f32 %v2465, 0.01
        %v2526 = vmul.f32 %v2470, 0.01
        %v2527 = vmul.f32 %v2473, 0.01
        %v2528 = vmul.f32 %v2478, 0.01
        %v2529 = vmul.f32 %v2481, 0.01
        %v2530 = vmul.f32 %v2486, 0.01
        %v2531 = vmul.f32 %v2489, 0.01
        %v2532 = vmul.f32 %v2494, 0.01
        %v2533 = vmul.f32 %v2497, 0.01
        %v2534 = vmul.f32 %v2502, 0.01
        %v2535 = vmul.f32 %v2505, 0.01
        %v2536 = vmul.f32 %v2510, 0.01
        %v2537 = vmul.f32 %v2513, 0.01
        %v2538 = vmul.f32 %v2518, 0.01
        %v2539 = vmul.f32 %v2521, 0.01
        %v2540 = vmax.f32 %v2462, %v2524
        %v2541 = vmax.f32 %v2465, %v2525
        %v2542 = vmax.f32 %v2470, %v2526
        %v2543 = vmax.f32 %v2473, %v2527
        %v2544 = vmax.f32 %v2478, %v2528
        %v2545 = vmax.f32 %v2481, %v2529
        %v2546 = vmax.f32 %v2486, %v2530
        %v2547 = vmax.f32 %v2489, %v2531
        %v2548 = vmax.f32 %v2494, %v2532
        %v2549 = vmax.f32 %v2497, %v2533
        %v2550 = vmax.f32 %v2502, %v2534
        %v2551 = vmax.f32 %v2505, %v2535
        %v2552 = vmax.f32 %v2510, %v2536
        %v2553 = vmax.f32 %v2513, %v2537
        %v2554 = vmax.f32 %v2518, %v2538
        %v2555 = vmax.f32 %v2521, %v2539
        %v2556 = vld [vmem:[#allocation8 + $0x100] sm:$0xf]
        %v2557 = vld [vmem:[#allocation8 + $0x104] sm:$0xf]
        %v2558 = vld [vmem:[#allocation8 + $0x108] sm:$0xf]
        %v2559 = vld [vmem:[#allocation8 + $0x10c] sm:$0xf]
        %v2560 = vld [vmem:[#allocation8 + $0x110] sm:$0xf]
        %v2561 = vld [vmem:[#allocation8 + $0x114] sm:$0xf]
        %v2562 = vld [vmem:[#allocation8 + $0x118] sm:$0xf]
        %v2563 = vld [vmem:[#allocation8 + $0x11c] sm:$0xf]
        %v2564 = vld [vmem:[#allocation8 + $0x120] sm:$0xf]
        %v2565 = vld [vmem:[#allocation8 + $0x124] sm:$0xf]
        %v2566 = vld [vmem:[#allocation8 + $0x128] sm:$0xf]
        %v2567 = vld [vmem:[#allocation8 + $0x12c] sm:$0xf]
        %v2568 = vld [vmem:[#allocation8 + $0x130] sm:$0xf]
        %v2569 = vld [vmem:[#allocation8 + $0x134] sm:$0xf]
        %v2570 = vld [vmem:[#allocation8 + $0x138] sm:$0xf]
        %v2571 = vld [vmem:[#allocation8 + $0x13c] sm:$0xf]
        %v2572 = vld [vmem:[#allocation10 + $0x5] ss:$0 sm:$0xff]
        %v2573 = vpack.c.bf16 %v2541, %v2540
        %v2574 = vpack.c.bf16 %v2543, %v2542
        %v2575 = vpack.c.bf16 %v2545, %v2544
        %v2576 = vpack.c.bf16 %v2547, %v2546
        %v2577 = vpack.c.bf16 %v2549, %v2548
        %v2578 = vpack.c.bf16 %v2551, %v2550
        %v2579 = vpack.c.bf16 %v2553, %v2552
        %v2580 = vpack.c.bf16 %v2555, %v2554
        %v2597 = vunpack.c.l.b16 %v2556
        %v2598 = vunpack.c.l.b16 %v2557
        %v2599 = vunpack.c.l.b16 %v2558
        %v2600 = vunpack.c.l.b16 %v2559
        %v2601 = vunpack.c.l.b16 %v2560
        %v2602 = vunpack.c.l.b16 %v2561
        %v2603 = vunpack.c.l.b16 %v2562
        %v2604 = vunpack.c.l.b16 %v2563
        %v2605 = vunpack.c.l.b16 %v2564
        %v2606 = vunpack.c.l.b16 %v2565
        %v2607 = vunpack.c.l.b16 %v2566
        %v2608 = vunpack.c.l.b16 %v2567
        %v2609 = vunpack.c.l.b16 %v2568
        %v2610 = vunpack.c.l.b16 %v2569
        %v2611 = vunpack.c.l.b16 %v2570
        %v2612 = vunpack.c.l.b16 %v2571
        %v2613 = vpack.c.b16 %v2598, %v2597
        %v2614 = vpack.c.b16 %v2600, %v2599
        %v2615 = vpack.c.b16 %v2602, %v2601
        %v2616 = vpack.c.b16 %v2604, %v2603
        %v2617 = vpack.c.b16 %v2606, %v2605
        %v2618 = vpack.c.b16 %v2608, %v2607
        %v2619 = vpack.c.b16 %v2610, %v2609
        %v2620 = vpack.c.b16 %v2612, %v2611
        %2629 = vmatprep.subr.bf16.mxu0 0
        %2630 = vmatpush1.bf16.msra.mxu0 %v2613
        %2631 = vmatprep.subr.bf16.mxu0 0
        %2632 = vmatpush1.bf16.msra.mxu0 %v2614
        %2633 = vmatprep.subr.bf16.mxu0 0
        %2634 = vmatpush1.bf16.msra.mxu0 %v2615
        %2635 = vmatprep.subr.bf16.mxu0 0
        %2636 = vmatpush1.bf16.msra.mxu0 %v2616
        %2637 = vmatprep.subr.bf16.mxu0 0
        %2638 = vmatpush1.bf16.msra.mxu0 %v2617
        %2639 = vmatprep.subr.bf16.mxu0 0
        %2640 = vmatpush1.bf16.msra.mxu0 %v2618
        %2641 = vmatprep.subr.bf16.mxu0 0
        %2642 = vmatpush1.bf16.msra.mxu0 %v2619
        %2643 = vmatprep.subr.bf16.mxu0 0
        %2644 = vmatpush1.bf16.msra.mxu0 %v2620
        %2645 = vmatprep.subr.bf16.mxu0 0
        %2646 = vmatpush1.bf16.msra.mxu0 0
        %2647 = vmatprep.subr.bf16.mxu0 0
        %2648 = vmatpush1.bf16.msra.mxu0 0
        %2649 = vmatprep.subr.bf16.mxu0 0
        %2650 = vmatpush1.bf16.msra.mxu0 0
        %2651 = vmatprep.subr.bf16.mxu0 0
        %2652 = vmatpush1.bf16.msra.mxu0 0
        %2653 = vmatprep.subr.bf16.mxu0 0
        %2654 = vmatpush1.bf16.msra.mxu0 0
        %2655 = vmatprep.subr.bf16.mxu0 0
        %2656 = vmatpush1.bf16.msra.mxu0 0
        %2657 = vmatprep.subr.bf16.mxu0 0
        %2658 = vmatpush1.bf16.msra.mxu0 0
        %2659 = vmatprep.subr.bf16.mxu0 0
        %2660 = vmatpush1.bf16.msra.mxu0 0
        %2661 = vmatprep.mubr.bf16.mxu0 0
        %2662 = vmatmul.mubr.bf16.gmra.mrb[0].mxu0 %v2573
        %v2663 = vpop.f32.mrb[0].mxu0
        %v2664 = vadd.f32 %v2572, %v2663
        %v2665 = vpop.f32.mrb[0].mxu0
        %v2666 = vpop.f32.mrb[0].mxu0
        %v2667 = vadd.f32 %v2572, %v2666
        %v2668 = vpop.f32.mrb[0].mxu0
        %2669 = vmatprep.mubr.bf16.mxu0 0
        %2670 = vmatmul.mubr.bf16.gmra.mrb[0].mxu0 %v2574
        %v2671 = vpop.f32.mrb[0].mxu0
        %v2672 = vadd.f32 %v2572, %v2671
        %v2673 = vpop.f32.mrb[0].mxu0
        %v2674 = vpop.f32.mrb[0].mxu0
        %v2675 = vadd.f32 %v2572, %v2674
        %v2676 = vpop.f32.mrb[0].mxu0
        %2677 = vmatprep.mubr.bf16.mxu0 0
        %2678 = vmatmul.mubr.bf16.gmra.mrb[0].mxu0 %v2575
        %v2679 = vpop.f32.mrb[0].mxu0
        %v2680 = vadd.f32 %v2572, %v2679
        %v2681 = vpop.f32.mrb[0].mxu0
        %v2682 = vpop.f32.mrb[0].mxu0
        %v2683 = vadd.f32 %v2572, %v2682
        %v2684 = vpop.f32.mrb[0].mxu0
        %2685 = vmatprep.mubr.bf16.mxu0 0
        %2686 = vmatmul.mubr.bf16.gmra.mrb[0].mxu0 %v2576
        %v2687 = vpop.f32.mrb[0].mxu0
        %v2688 = vadd.f32 %v2572, %v2687
        %v2689 = vpop.f32.mrb[0].mxu0
        %v2690 = vpop.f32.mrb[0].mxu0
        %v2691 = vadd.f32 %v2572, %v2690
        %v2692 = vpop.f32.mrb[0].mxu0
        %2693 = vmatprep.mubr.bf16.mxu0 0
        %2694 = vmatmul.mubr.bf16.gmra.mrb[0].mxu0 %v2577
        %v2695 = vpop.f32.mrb[0].mxu0
        %v2696 = vadd.f32 %v2572, %v2695
        %v2697 = vpop.f32.mrb[0].mxu0
        %v2698 = vpop.f32.mrb[0].mxu0
        %v2699 = vadd.f32 %v2572, %v2698
        %v2700 = vpop.f32.mrb[0].mxu0
        %2701 = vmatprep.mubr.bf16.mxu0 0
        %2702 = vmatmul.mubr.bf16.gmra.mrb[0].mxu0 %v2578
        %v2703 = vpop.f32.mrb[0].mxu0
        %v2704 = vadd.f32 %v2572, %v2703
        %v2705 = vpop.f32.mrb[0].mxu0
        %v2706 = vpop.f32.mrb[0].mxu0
        %v2707 = vadd.f32 %v2572, %v2706
        %v2708 = vpop.f32.mrb[0].mxu0
        %2709 = vmatprep.mubr.bf16.mxu0 0
        %2710 = vmatmul.mubr.bf16.gmra.mrb[0].mxu0 %v2579
        %v2711 = vpop.f32.mrb[0].mxu0
        %v2712 = vadd.f32 %v2572, %v2711
        %v2713 = vpop.f32.mrb[0].mxu0
        %v2714 = vpop.f32.mrb[0].mxu0
        %v2715 = vadd.f32 %v2572, %v2714
        %v2716 = vpop.f32.mrb[0].mxu0
        %2717 = vmatprep.mubr.bf16.mxu0 0
        %2718 = vmatmul.mubr.bf16.gmra.mrb[0].mxu0 %v2580
        %v2719 = vpop.f32.mrb[0].mxu0
        %v2720 = vadd.f32 %v2572, %v2719
        %v2721 = vpop.f32.mrb[0].mxu0
        %v2722 = vpop.f32.mrb[0].mxu0
        %v2723 = vadd.f32 %v2572, %v2722
        %v2724 = vpop.f32.mrb[0].mxu0
        %2725 = vdwg.mxu0
        %v2726 = vmul.f32 %v2664, 0.01
        %v2727 = vmul.f32 %v2667, 0.01
        %v2728 = vmul.f32 %v2672, 0.01
        %v2729 = vmul.f32 %v2675, 0.01
        %v2730 = vmul.f32 %v2680, 0.01
        %v2731 = vmul.f32 %v2683, 0.01
        %v2732 = vmul.f32 %v2688, 0.01
        %v2733 = vmul.f32 %v2691, 0.01
        %v2734 = vmul.f32 %v2696, 0.01
        %v2735 = vmul.f32 %v2699, 0.01
        %v2736 = vmul.f32 %v2704, 0.01
        %v2737 = vmul.f32 %v2707, 0.01
        %v2738 = vmul.f32 %v2712, 0.01
        %v2739 = vmul.f32 %v2715, 0.01
        %v2740 = vmul.f32 %v2720, 0.01
        %v2741 = vmul.f32 %v2723, 0.01
        %v2742 = vmax.f32 %v2664, %v2726
        %v2743 = vmax.f32 %v2667, %v2727
        %v2744 = vmax.f32 %v2672, %v2728
        %v2745 = vmax.f32 %v2675, %v2729
        %v2746 = vmax.f32 %v2680, %v2730
        %v2747 = vmax.f32 %v2683, %v2731
        %v2748 = vmax.f32 %v2688, %v2732
        %v2749 = vmax.f32 %v2691, %v2733
        %v2750 = vmax.f32 %v2696, %v2734
        %v2751 = vmax.f32 %v2699, %v2735
        %v2752 = vmax.f32 %v2704, %v2736
        %v2753 = vmax.f32 %v2707, %v2737
        %v2754 = vmax.f32 %v2712, %v2738
        %v2755 = vmax.f32 %v2715, %v2739
        %v2756 = vmax.f32 %v2720, %v2740
        %v2757 = vmax.f32 %v2723, %v2741
        %v2758 = vpack.c.bf16 %v2743, %v2742
        %v2759 = vpack.c.bf16 %v2745, %v2744
        %v2760 = vpack.c.bf16 %v2747, %v2746
        %v2761 = vpack.c.bf16 %v2749, %v2748
        %v2762 = vpack.c.bf16 %v2751, %v2750
        %v2763 = vpack.c.bf16 %v2753, %v2752
        %v2764 = vpack.c.bf16 %v2755, %v2754
        %v2765 = vpack.c.bf16 %v2757, %v2756
        %v2774 = vunpack.c.l.b16 %v2758
        %v2775 = vunpack.c.h.b16 %v2758
        %v2776 = vunpack.c.l.b16 %v2759
        %v2777 = vunpack.c.h.b16 %v2759
        %v2778 = vunpack.c.l.b16 %v2760
        %v2779 = vunpack.c.h.b16 %v2760
        %v2780 = vunpack.c.l.b16 %v2761
        %v2781 = vunpack.c.h.b16 %v2761
        %v2782 = vunpack.c.l.b16 %v2762
        %v2783 = vunpack.c.h.b16 %v2762
        %v2784 = vunpack.c.l.b16 %v2763
        %v2785 = vunpack.c.h.b16 %v2763
        %v2786 = vunpack.c.l.b16 %v2764
        %v2787 = vunpack.c.h.b16 %v2764
        %v2788 = vunpack.c.l.b16 %v2765
        %v2789 = vunpack.c.h.b16 %v2765
        %v2790 = vpack.c.b16 %v2774, %v2774
        %v2791 = vpack.c.b16 %v2775, %v2775
        %v2792 = vpack.c.b16 %v2776, %v2776
        %v2793 = vpack.c.b16 %v2777, %v2777
        %v2794 = vpack.c.b16 %v2778, %v2778
        %v2795 = vpack.c.b16 %v2779, %v2779
        %v2796 = vpack.c.b16 %v2780, %v2780
        %v2797 = vpack.c.b16 %v2781, %v2781
        %v2798 = vpack.c.b16 %v2782, %v2782
        %v2799 = vpack.c.b16 %v2783, %v2783
        %v2800 = vpack.c.b16 %v2784, %v2784
        %v2801 = vpack.c.b16 %v2785, %v2785
        %v2802 = vpack.c.b16 %v2786, %v2786
        %v2803 = vpack.c.b16 %v2787, %v2787
        %v2804 = vpack.c.b16 %v2788, %v2788
        %v2805 = vpack.c.b16 %v2789, %v2789
        %2822 = vst [vmem:[%s299] sm:$0xf] %v2790
        %2823 = vst [vmem:[%s299 + $0x4] sm:$0xf] %v2791
        %2824 = vst [vmem:[%s299 + $0x8] sm:$0xf] %v2792
        %2825 = vst [vmem:[%s299 + $0xc] sm:$0xf] %v2793
        %2826 = vst [vmem:[%s299 + $0x10] sm:$0xf] %v2794
        %2827 = vst [vmem:[%s299 + $0x14] sm:$0xf] %v2795
        %2828 = vst [vmem:[%s299 + $0x18] sm:$0xf] %v2796
        %2829 = vst [vmem:[%s299 + $0x1c] sm:$0xf] %v2797
        %2830 = vst [vmem:[%s299 + $0x20] sm:$0xf] %v2798
        %2831 = vst [vmem:[%s299 + $0x24] sm:$0xf] %v2799
        %2832 = vst [vmem:[%s299 + $0x28] sm:$0xf] %v2800
        %2833 = vst [vmem:[%s299 + $0x2c] sm:$0xf] %v2801
        %2834 = vst [vmem:[%s299 + $0x30] sm:$0xf] %v2802
        %2835 = vst [vmem:[%s299 + $0x34] sm:$0xf] %v2803
        %2836 = vst [vmem:[%s299 + $0x38] sm:$0xf] %v2804
        %2837 = vst [vmem:[%s299 + $0x3c] sm:$0xf] %v2805
        %s2838 = sand.u32 %s142, 1
        %s2839 = scalar_lea.sflag [#allocation4], %s2838
        %s2840 = sand.u32 %s142, 1
        %s2841 = smul.addr %s2840, 64
        %s2842 = scalar_lea.vmem [#allocation11], %s2841
        // Predicated region
        $region61: #{tpu_custom_call.1} parent=39 // pred_check
          %p2843 = pneg %p152
        $region62: #{tpu_custom_call.1} parent=39 // pred_check_branch
          %2845 = sbr.rel (%p2843) target = $region64
        $region63: #{tpu_custom_call.1} parent=39 // pred_region
          %s2846 = smul.u32 16, %s24
          %s2848 = ssub.s32 1024, 1024
          %2849 = vsyncadd %s2839, %s2848
          %s2850 = smul.addr %s2846, 64
          %s2851 = scalar_lea.hbm %s5, %s2850
          %s2852 = sshll.u32 %s2842, 4
          %s2853 = int_to_ptr.vmem [resolvable:$true] %s2852
          %2858 = dma.vmem_to_hbm [thread:$0]  %s2853, 1024, %s2851, %s2839, 64, 64, 4
        $region64: #{tpu_custom_call.1} parent=39 // pred_fallthru
          _
      $region40: #{tpu_custom_call.1} parent=5 // pred_fallthru
        _
      %p2859 = scmp.le.s32.totalorder 2, %s19
      // Predicated region
      $region65: #{tpu_custom_call.1} parent=5 // pred_check
        %p2860 = pneg %p2859
      $region66: #{tpu_custom_call.1} parent=5 // pred_check_branch
        %2862 = sbr.rel (%p2860) target = $region68
      $region67: #{tpu_custom_call.1} parent=5 // pred_region
        %s2863 = ssub.s32 %s19, 2
        // Predicated region
        $region69: #{tpu_custom_call.1} parent=67 // pred_check
          %p2864 = pneg %p158
        $region70: #{tpu_custom_call.1} parent=67 // pred_check_branch
          %2866 = sbr.rel (%p2864) target = $region72
        $region71: #{tpu_custom_call.1} parent=67 // pred_region
          %s2867 = sand.u32 %s143, 1
          %s2868 = scalar_lea.sflag [#allocation4], %s2867
          %s2869 = sand.u32 %s143, 1
          %s2870 = smul.addr %s2869, 64
          %s2871 = scalar_lea.vmem [#allocation11], %s2870
          %2872 = dma.done %s2868, 1024
        $region72: #{tpu_custom_call.1} parent=67 // pred_fallthru
          _
      $region68: #{tpu_custom_call.1} parent=5 // pred_fallthru
        _
    $region6: #{tpu_custom_call.1} parent=1 // loop_footer
      %s23 = sadd.s32 1, %s19
    $region7: #{tpu_custom_call.1} parent=1 // loop_footer_branch
      %18 = sbr.rel target = $region3
    $region8: #{tpu_custom_call.1} parent=1 // loop_exit
      _
    %2873 = vsyncpa [#allocation3], 1
    %s2874 = scalar_lea.sflag [#allocation3], 1
    %2875 = vsyncpa %s2874, 1
    %2876 = vsyncpa [#allocation6], 1
    %2877 = vsyncpa [#allocation9], 1
    %2878 = vsyncpa [#allocation4], 1
    %s2879 = scalar_lea.sflag [#allocation4], 1
    %2880 = vsyncpa %s2879, 1

</llo_original>
